<compile_context>
chip_gen: v6e
topology: v6e:2x2x1
jax: 0.10.0
libtpu: 0.0.40
codegen_flags: <defaults>
</compile_context>

<pallas_src>
import jax
import jax.numpy as jnp
from jax import lax
from jax.experimental import pallas as pl
from jax.experimental.pallas import tpu as pltpu


def tdm_kernel(spt_ref, qry_ref, w1_ref, w2_ref, scl_ref, bia_ref, wp_ref, wq_ref):
    """Fused TDM forward ('Proto', eval) for one episode.

    Layouts (lane-dense: c / 6c in the 128-lane axis):
      spt_ref : (shot, way, m, c)
      qry_ref : (batch, m, c)
      w1_ref  : (c, 6c)  bf16   concat of the three linear1 weights (stored transposed, h = x @ w1)
      w2_ref  : (c, 6c)  bf16   concat of the three linear2 weights in torch layout (y = h @ w2.T)
      scl/bia : (R, 6c)  f32    eval-BN scale/bias tables, zero outside each row's own 2c block
      wp_ref  : (way, c)        0.25 * (prt_self + prt_other) SandGlass outputs
      wq_ref  : (batch, c)      0.5  * qry_self SandGlass output
    """
    shot, way, m, c = spt_ref.shape
    batch = qry_ref.shape[0]
    f32 = jnp.float32
    inv_m = f32(1.0 / m)
    inf = f32(jnp.inf)

    # ---- prototype = mean over shots (block already resident in VMEM) ----
    prt = jnp.mean(spt_ref[...].astype(f32), axis=0)           # (way, m, c)
    qry = qry_ref[...].astype(f32)                              # (batch, m, c)

    # ---- one channel-GAP lane reduce for prototypes and queries together ----
    feats = jnp.concatenate([prt, qry], axis=0)                 # (way+batch, m, c)
    gap = jnp.mean(feats, axis=-1, keepdims=True)               # (way+batch, m, 1)

    # ---- query self-distance ----
    diff_q = qry - gap[way:]                                    # (batch, m, c)
    dist_q = jnp.sum(diff_q * diff_q, axis=1) * inv_m           # (batch, c)

    # ---- prototype self / other distances: direct form, static loop over the "other" class v ----
    # Pure VPU/XLU work (no tiny MXU push/drain ops, no expansion cancellation).
    row_id = lax.broadcasted_iota(jnp.int32, (way, c), 0)       # (way, c)
    dist_self = jnp.zeros((way, c), f32)
    dist_other = jnp.full((way, c), inf, f32)
    for v in range(way):
        diff_v = prt - gap[v][None, :, :]                       # (way, m, c)
        d_v = jnp.sum(diff_v * diff_v, axis=1) * inv_m          # d_v[w, i] = ||prt[w,:,i]-gap[v,:]||^2/m
        on_diag = row_id == v
        dist_self = dist_self + jnp.where(on_diag, d_v, 0.0)
        dist_other = jnp.minimum(dist_other, jnp.where(on_diag, inf, d_v))
    # TODO(synk): way == 1 leaves dist_other at +inf (degenerate in the torch reference too).

    # ---- all three SandGlass blocks fused into two MXU dots ----
    # Row layout: [0,way)->prt_self, [way,2*way)->prt_other, [2*way,R)->qry_self.
    # Block selection is encoded in scl/bia tables: outside a row's block, ReLU(h*0 + 0) = 0,
    # so the second contraction only picks up that row's own W2 block.
    dists = jnp.concatenate([dist_self, dist_other, dist_q], axis=0)        # (R, c)
    h = jnp.dot(dists.astype(jnp.bfloat16), w1_ref[...],
                preferred_element_type=f32)                                 # (R, 6c)
    h = jnp.maximum(h * scl_ref[...] + bia_ref[...], 0.0)                   # BN(eval) + ReLU
    y = lax.dot_general(h.astype(jnp.bfloat16), w2_ref[...],
                        (((1,), (1,)), ((), ())),
                        preferred_element_type=f32)                         # (R, c)
    w_all = 1.0 + jnp.tanh(y)

    # weight = 0.5*(0.5*prt_self + 0.5*prt_other) + 0.5*qry_self; broadcast-add done in the wrapper.
    # add_noise() is identity in eval mode.
    wp_ref[...] = (0.25 * (w_all[:way, :] + w_all[way:2 * way, :])).astype(wp_ref.dtype)
    wq_ref[...] = (0.5 * w_all[2 * way:, :]).astype(wq_ref.dtype)


def _const_spec(shape):
    nd = len(shape)
    return pl.BlockSpec(shape, lambda e, _nd=nd: (0,) * _nd)


@jax.jit
def tdm_forward(spt, qry, w1, w2t, bn_scale, bn_bias):
    """Episode-batched TDM forward ('Proto', eval).

    spt: (E, way, shot, c, m)   qry: (E, batch, 1, c, m)   (torch layouts, batched over episodes)
    w1:  (3, c, 2c) linear1 stored transposed   w2t: (3, c, 2c) torch layout
    bn_scale / bn_bias: (3, 2c) eval BatchNorm folded.   Returns (E, way, batch, c).
    """
    E, way, shot, c, m = spt.shape
    batch = qry.shape[1]
    R = 2 * way + batch
    two_c = 2 * c

    # Lane-dense layouts: channel dim c into the 128-lane axis.
    spt_t = jnp.transpose(spt, (0, 2, 1, 4, 3))                      # (E, shot, way, m, c)
    qry_t = jnp.transpose(jnp.squeeze(qry, axis=2), (0, 1, 3, 2))    # (E, batch, m, c)

    # Concatenated SandGlass weights (bf16 => single-pass MXU, half the DMA) and per-row
    # scale/bias tables that also encode the block-diagonal structure.
    w1_cat = jnp.concatenate([w1[0], w1[1], w1[2]], axis=1).astype(jnp.bfloat16)     # (c, 6c)
    w2_cat = jnp.concatenate([w2t[0], w2t[1], w2t[2]], axis=1).astype(jnp.bfloat16)  # (c, 6c)

    scl_tab = jnp.zeros((R, 3 * two_c), jnp.float32)
    bia_tab = jnp.zeros((R, 3 * two_c), jnp.float32)
    for lo, hi, g in ((0, way, 0), (way, 2 * way, 1), (2 * way, R, 2)):
        scl_tab = scl_tab.at[lo:hi, g * two_c:(g + 1) * two_c].set(bn_scale[g])
        bia_tab = bia_tab.at[lo:hi, g * two_c:(g + 1) * two_c].set(bn_bias[g])

    wp, wq = pl.pallas_call(
        tdm_kernel,
        out_shape=(jax.ShapeDtypeStruct((E, way, c), jnp.float32),
                   jax.ShapeDtypeStruct((E, batch, c), jnp.float32)),
        grid=(E,),
        in_specs=[
            pl.BlockSpec((pl.Squeezed(), shot, way, m, c), lambda e: (e, 0, 0, 0, 0)),
            pl.BlockSpec((pl.Squeezed(), batch, m, c), lambda e: (e, 0, 0, 0)),
            _const_spec((c, 3 * two_c)),
            _const_spec((c, 3 * two_c)),
            _const_spec((R, 3 * two_c)),
            _const_spec((R, 3 * two_c)),
        ],
        out_specs=(
            pl.BlockSpec((pl.Squeezed(), way, c), lambda e: (e, 0, 0)),
            pl.BlockSpec((pl.Squeezed(), batch, c), lambda e: (e, 0, 0)),
        ),
        compiler_params=pltpu.CompilerParams(
            dimension_semantics=("parallel",)),
    )(spt_t, qry_t, w1_cat, w2_cat, scl_tab, bia_tab)

    # weight = 0.25*prt_self + 0.25*prt_other + 0.5*qry_self, broadcast over (way, batch).
    return wp[:, :, None, :] + wq[:, None, :, :]                     # (E, way, batch, c)


def init_params(key, c):
    """Deterministic init mimicking the module's __init__.

    Linear weights: xavier_uniform.  linear1 stored transposed as (c, 2c); linear2 in torch layout
    (c, 2c).  BatchNorm1d (eval): gamma=1, beta=0, running_mean=0, running_var=1, eps=1e-5 folded
    into per-feature scale/bias.  Block order: [prt_self, prt_other, qry_self].
    """
    ks = jax.random.split(key, 6)

    def xavier(k, shape, fan_in, fan_out):
        bound = (6.0 / (fan_in + fan_out)) ** 0.5
        return jax.random.uniform(k, shape, jnp.float32, -bound, bound)

    w1 = jnp.stack([xavier(ks[i], (c, 2 * c), c, 2 * c) for i in range(3)])        # (3, c, 2c)
    w2t = jnp.stack([xavier(ks[3 + i], (c, 2 * c), 2 * c, c) for i in range(3)])   # (3, c, 2c)

    eps = 1e-5
    bn_scale = jnp.full((3, 2 * c), 1.0 / (1.0 + eps) ** 0.5, jnp.float32)
    bn_bias = jnp.zeros((3, 2 * c), jnp.float32)
    return w1, w2t, bn_scale, bn_bias


def tdm_reference(spt, qry, w1, w2t, bn_scale, bn_bias):
    """Pure-JAX transcription of the PyTorch TDM forward ('Proto', eval) for one episode."""
    way, shot, c, m = spt.shape
    prt = spt.mean(axis=1)                                     # (way, c, m)
    q = jnp.squeeze(qry, axis=1)                               # (batch, c, m)

    gap = prt.mean(axis=-2)                                    # (way, m)
    d = jnp.sum((prt[:, :, None, :] - gap[None, None, :, :]) ** 2, axis=-1) / m   # (way, c, way)
    dist_self = d[jnp.arange(way), :, jnp.arange(way)]                             # (way, c)
    diag = jnp.eye(way, dtype=bool)[:, None, :]                                    # (way, 1, way)
    dist_other = jnp.min(jnp.where(diag, jnp.inf, d), axis=-1)                     # (way, c)

    gap_q = q.mean(axis=-2, keepdims=True)                     # (batch, 1, m)
    dist_q = jnp.sum((q - gap_q) ** 2, axis=-1) / m            # (batch, c)

    def sandglass(x, i):
        h = x @ w1[i]
        h = jax.nn.relu(h * bn_scale[i] + bn_bias[i])
        return 1.0 + jnp.tanh(h @ w2t[i].T)

    wps = sandglass(dist_self, 0)[:, None, :]                  # (way, 1, c)
    wpo = sandglass(dist_other, 1)[:, None, :]
    wqs = sandglass(dist_q, 2)[None, :, :]                     # (1, batch, c)
    weight_prt = 0.5 * wps + 0.5 * wpo
    return 0.5 * weight_prt + 0.5 * wqs                        # (way, batch, c)


if __name__ == "__main__":
    key = jax.random.PRNGKey(0)
    k_spt, k_qry, k_par = jax.random.split(key, 3)

    # 4 episodes of 4-way 2-shot, 8 queries, c=64 (non-resnet in_c), m=16 spatial positions.
    E, way, shot, batch, c, m = 4, 4, 2, 8, 64, 16
    spt = jax.random.normal(k_spt, (E, way, shot, c, m), jnp.float32)
    qry = jax.random.normal(k_qry, (E, batch, 1, c, m), jnp.float32)

    w1, w2t, bn_scale, bn_bias = init_params(k_par, c)

    out = jax.block_until_ready(tdm_forward(spt, qry, w1, w2t, bn_scale, bn_bias))
    ref = jax.block_until_ready(
        jax.vmap(lambda s, q: tdm_reference(s, q, w1, w2t, bn_scale, bn_bias))(spt, qry))

    assert out.shape == (E, way, batch, c), out.shape
    assert bool(jnp.all(jnp.isfinite(out)))
    # SandGlass outputs are in (0, 2); the convex combination stays in (0, 2).
    assert float(jnp.min(out)) >= 0.0 and float(jnp.max(out)) <= 2.0
    # Tolerance covers the bf16 MXU operands (accumulation stays f32).
    err = float(jnp.max(jnp.abs(out - ref)))
    assert err < 4e-2, err
    print("KERNEL_OK")
</pallas_src>

<mosaic_0001>
module attributes {stable_mosaic.version = 11 : i64} {
  func.func @tdm_kernel(%arg0: i32, %arg1: memref<1x2x4x16x64xf32, #tpu.memory_space<vmem>>, %arg2: memref<1x8x16x64xf32, #tpu.memory_space<vmem>>, %arg3: memref<64x384xbf16, #tpu.memory_space<vmem>>, %arg4: memref<64x384xbf16, #tpu.memory_space<vmem>>, %arg5: memref<16x384xf32, #tpu.memory_space<vmem>>, %arg6: memref<16x384xf32, #tpu.memory_space<vmem>>, %arg7: memref<1x4x64xf32, #tpu.memory_space<vmem>>, %arg8: memref<1x8x64xf32, #tpu.memory_space<vmem>>) attributes {dimension_semantics = [#tpu.dimension_semantics<parallel>], iteration_bounds = array<i64: 4>, scalar_prefetch = 0 : i64, scratch_operands = 0 : i64, tpu.core_type = #tpu.core_type<tc>, window_params = [{transform_indices = @transform_0, window_bounds = array<i64: 1, 2, 4, 16, 64>}, {transform_indices = @transform_1, window_bounds = array<i64: 1, 8, 16, 64>}, {pipeline_mode = #tpu.pipeline_mode<synchronous>, transform_indices = @transform_2, window_bounds = array<i64: 64, 384>}, {pipeline_mode = #tpu.pipeline_mode<synchronous>, transform_indices = @transform_3, window_bounds = array<i64: 64, 384>}, {pipeline_mode = #tpu.pipeline_mode<synchronous>, transform_indices = @transform_4, window_bounds = array<i64: 16, 384>}, {pipeline_mode = #tpu.pipeline_mode<synchronous>, transform_indices = @transform_5, window_bounds = array<i64: 16, 384>}, {transform_indices = @transform_6, window_bounds = array<i64: 1, 4, 64>}, {transform_indices = @transform_7, window_bounds = array<i64: 1, 8, 64>}]} {
    %c0 = arith.constant 0 : index
    %c0_0 = arith.constant 0 : index
    %c0_1 = arith.constant 0 : index
    %c0_2 = arith.constant 0 : index
    %c0_3 = arith.constant 0 : index
    %0 = vector.load %arg1[%c0, %c0_0, %c0_1, %c0_2, %c0_3] : memref<1x2x4x16x64xf32, #tpu.memory_space<vmem>>, vector<1x2x4x16x64xf32>
    %1 = vector.shape_cast %0 : vector<1x2x4x16x64xf32> to vector<2x4x16x64xf32>
    %cst = arith.constant dense<0.000000e+00> : vector<4x16x64xf32>
    %2 = vector.multi_reduction <add>, %1, %cst [0] : vector<2x4x16x64xf32> to vector<4x16x64xf32>
    %cst_4 = arith.constant 2.000000e+00 : f32
    %3 = vector.broadcast %cst_4 : f32 to vector<4x16x64xf32>
    %4 = arith.divf %2, %3 : vector<4x16x64xf32>
    %c0_5 = arith.constant 0 : index
    %c0_6 = arith.constant 0 : index
    %c0_7 = arith.constant 0 : index
    %c0_8 = arith.constant 0 : index
    %5 = vector.load %arg2[%c0_5, %c0_6, %c0_7, %c0_8] : memref<1x8x16x64xf32, #tpu.memory_space<vmem>>, vector<1x8x16x64xf32>
    %6 = vector.shape_cast %5 : vector<1x8x16x64xf32> to vector<8x16x64xf32>
    %7 = tpu.concatenate %4, %6 in 0 : vector<4x16x64xf32>, vector<8x16x64xf32> -> vector<12x16x64xf32>
    %cst_9 = arith.constant dense<0.000000e+00> : vector<12x16xf32>
    %8 = vector.multi_reduction <add>, %7, %cst_9 [2] : vector<12x16x64xf32> to vector<12x16xf32>
    %9 = vector.shape_cast %8 : vector<12x16xf32> to vector<12x16x1xf32>
    %cst_10 = arith.constant 6.400000e+01 : f32
    %10 = vector.broadcast %cst_10 : f32 to vector<12x16x1xf32>
    %11 = arith.divf %9, %10 : vector<12x16x1xf32>
    %12 = vector.extract_strided_slice %11 {offsets = [4, 0, 0], sizes = [8, 16, 1], strides = [1, 1, 1]} : vector<12x16x1xf32> to vector<8x16x1xf32>
    %13 = vector.broadcast %12 : vector<8x16x1xf32> to vector<8x16x64xf32>
    %14 = arith.subf %6, %13 : vector<8x16x64xf32>
    %15 = arith.mulf %14, %14 : vector<8x16x64xf32>
    %cst_11 = arith.constant dense<0.000000e+00> : vector<8x64xf32>
    %16 = vector.multi_reduction <add>, %15, %cst_11 [1] : vector<8x16x64xf32> to vector<8x64xf32>
    %cst_12 = arith.constant 6.250000e-02 : f32
    %17 = vector.broadcast %cst_12 : f32 to vector<8x64xf32>
    %18 = arith.mulf %16, %17 : vector<8x64xf32>
    %19 = tpu.iota {dimensions = array<i32: 0>} : vector<4x64xi32>
    %cst_13 = arith.constant 0.000000e+00 : f32
    %20 = vector.broadcast %cst_13 : f32 to vector<4x64xf32>
    %cst_14 = arith.constant 0x7F800000 : f32
    %21 = vector.broadcast %cst_14 : f32 to vector<4x64xf32>
    %22 = vector.extract_strided_slice %11 {offsets = [0, 0, 0], sizes = [1, 16, 1], strides = [1, 1, 1]} : vector<12x16x1xf32> to vector<1x16x1xf32>
    %23 = vector.shape_cast %22 : vector<1x16x1xf32> to vector<16x1xf32>
    %24 = vector.shape_cast %23 : vector<16x1xf32> to vector<1x16x1xf32>
    %25 = vector.broadcast %24 : vector<1x16x1xf32> to vector<4x16x64xf32>
    %26 = arith.subf %4, %25 : vector<4x16x64xf32>
    %27 = arith.mulf %26, %26 : vector<4x16x64xf32>
    %cst_15 = arith.constant dense<0.000000e+00> : vector<4x64xf32>
    %28 = vector.multi_reduction <add>, %27, %cst_15 [1] : vector<4x16x64xf32> to vector<4x64xf32>
    %cst_16 = arith.constant 6.250000e-02 : f32
    %29 = vector.broadcast %cst_16 : f32 to vector<4x64xf32>
    %30 = arith.mulf %28, %29 : vector<4x64xf32>
    %c0_i32 = arith.constant 0 : i32
    %31 = vector.broadcast %c0_i32 : i32 to vector<4x64xi32>
    %32 = arith.cmpi eq, %19, %31 : vector<4x64xi32>
    %cst_17 = arith.constant 0.000000e+00 : f32
    %33 = vector.broadcast %cst_17 : f32 to vector<4x64xf32>
    %34 = arith.select %32, %30, %33 : vector<4x64xi1>, vector<4x64xf32>
    %35 = arith.addf %20, %34 : vector<4x64xf32>
    %cst_18 = arith.constant 0x7F800000 : f32
    %36 = vector.broadcast %cst_18 : f32 to vector<4x64xf32>
    %37 = arith.select %32, %36, %30 : vector<4x64xi1>, vector<4x64xf32>
    %38 = arith.minimumf %21, %37 : vector<4x64xf32>
    %39 = vector.extract_strided_slice %11 {offsets = [1, 0, 0], sizes = [1, 16, 1], strides = [1, 1, 1]} : vector<12x16x1xf32> to vector<1x16x1xf32>
    %40 = vector.shape_cast %39 : vector<1x16x1xf32> to vector<16x1xf32>
    %41 = vector.shape_cast %40 : vector<16x1xf32> to vector<1x16x1xf32>
    %42 = vector.broadcast %41 : vector<1x16x1xf32> to vector<4x16x64xf32>
    %43 = arith.subf %4, %42 : vector<4x16x64xf32>
    %44 = arith.mulf %43, %43 : vector<4x16x64xf32>
    %cst_19 = arith.constant dense<0.000000e+00> : vector<4x64xf32>
    %45 = vector.multi_reduction <add>, %44, %cst_19 [1] : vector<4x16x64xf32> to vector<4x64xf32>
    %cst_20 = arith.constant 6.250000e-02 : f32
    %46 = vector.broadcast %cst_20 : f32 to vector<4x64xf32>
    %47 = arith.mulf %45, %46 : vector<4x64xf32>
    %c1_i32 = arith.constant 1 : i32
    %48 = vector.broadcast %c1_i32 : i32 to vector<4x64xi32>
    %49 = arith.cmpi eq, %19, %48 : vector<4x64xi32>
    %cst_21 = arith.constant 0.000000e+00 : f32
    %50 = vector.broadcast %cst_21 : f32 to vector<4x64xf32>
    %51 = arith.select %49, %47, %50 : vector<4x64xi1>, vector<4x64xf32>
    %52 = arith.addf %35, %51 : vector<4x64xf32>
    %cst_22 = arith.constant 0x7F800000 : f32
    %53 = vector.broadcast %cst_22 : f32 to vector<4x64xf32>
    %54 = arith.select %49, %53, %47 : vector<4x64xi1>, vector<4x64xf32>
    %55 = arith.minimumf %38, %54 : vector<4x64xf32>
    %56 = vector.extract_strided_slice %11 {offsets = [2, 0, 0], sizes = [1, 16, 1], strides = [1, 1, 1]} : vector<12x16x1xf32> to vector<1x16x1xf32>
    %57 = vector.shape_cast %56 : vector<1x16x1xf32> to vector<16x1xf32>
    %58 = vector.shape_cast %57 : vector<16x1xf32> to vector<1x16x1xf32>
    %59 = vector.broadcast %58 : vector<1x16x1xf32> to vector<4x16x64xf32>
    %60 = arith.subf %4, %59 : vector<4x16x64xf32>
    %61 = arith.mulf %60, %60 : vector<4x16x64xf32>
    %cst_23 = arith.constant dense<0.000000e+00> : vector<4x64xf32>
    %62 = vector.multi_reduction <add>, %61, %cst_23 [1] : vector<4x16x64xf32> to vector<4x64xf32>
    %cst_24 = arith.constant 6.250000e-02 : f32
    %63 = vector.broadcast %cst_24 : f32 to vector<4x64xf32>
    %64 = arith.mulf %62, %63 : vector<4x64xf32>
    %c2_i32 = arith.constant 2 : i32
    %65 = vector.broadcast %c2_i32 : i32 to vector<4x64xi32>
    %66 = arith.cmpi eq, %19, %65 : vector<4x64xi32>
    %cst_25 = arith.constant 0.000000e+00 : f32
    %67 = vector.broadcast %cst_25 : f32 to vector<4x64xf32>
    %68 = arith.select %66, %64, %67 : vector<4x64xi1>, vector<4x64xf32>
    %69 = arith.addf %52, %68 : vector<4x64xf32>
    %cst_26 = arith.constant 0x7F800000 : f32
    %70 = vector.broadcast %cst_26 : f32 to vector<4x64xf32>
    %71 = arith.select %66, %70, %64 : vector<4x64xi1>, vector<4x64xf32>
    %72 = arith.minimumf %55, %71 : vector<4x64xf32>
    %73 = vector.extract_strided_slice %11 {offsets = [3, 0, 0], sizes = [1, 16, 1], strides = [1, 1, 1]} : vector<12x16x1xf32> to vector<1x16x1xf32>
    %74 = vector.shape_cast %73 : vector<1x16x1xf32> to vector<16x1xf32>
    %75 = vector.shape_cast %74 : vector<16x1xf32> to vector<1x16x1xf32>
    %76 = vector.broadcast %75 : vector<1x16x1xf32> to vector<4x16x64xf32>
    %77 = arith.subf %4, %76 : vector<4x16x64xf32>
    %78 = arith.mulf %77, %77 : vector<4x16x64xf32>
    %cst_27 = arith.constant dense<0.000000e+00> : vector<4x64xf32>
    %79 = vector.multi_reduction <add>, %78, %cst_27 [1] : vector<4x16x64xf32> to vector<4x64xf32>
    %cst_28 = arith.constant 6.250000e-02 : f32
    %80 = vector.broadcast %cst_28 : f32 to vector<4x64xf32>
    %81 = arith.mulf %79, %80 : vector<4x64xf32>
    %c3_i32 = arith.constant 3 : i32
    %82 = vector.broadcast %c3_i32 : i32 to vector<4x64xi32>
    %83 = arith.cmpi eq, %19, %82 : vector<4x64xi32>
    %cst_29 = arith.constant 0.000000e+00 : f32
    %84 = vector.broadcast %cst_29 : f32 to vector<4x64xf32>
    %85 = arith.select %83, %81, %84 : vector<4x64xi1>, vector<4x64xf32>
    %86 = arith.addf %69, %85 : vector<4x64xf32>
    %cst_30 = arith.constant 0x7F800000 : f32
    %87 = vector.broadcast %cst_30 : f32 to vector<4x64xf32>
    %88 = arith.select %83, %87, %81 : vector<4x64xi1>, vector<4x64xf32>
    %89 = arith.minimumf %72, %88 : vector<4x64xf32>
    %90 = tpu.concatenate %86, %89, %18 in 0 : vector<4x64xf32>, vector<4x64xf32>, vector<8x64xf32> -> vector<16x64xf32>
    %91 = arith.truncf %90 : vector<16x64xf32> to vector<16x64xbf16>
    %c0_31 = arith.constant 0 : index
    %c0_32 = arith.constant 0 : index
    %92 = vector.load %arg3[%c0_31, %c0_32] : memref<64x384xbf16, #tpu.memory_space<vmem>>, vector<64x384xbf16>
    %cst_33 = arith.constant dense<0.000000e+00> : vector<16x384xf32>
    %93 = tpu.matmul %91, %92, %cst_33 {dimension_numbers = #tpu.dot_dimension_numbers<[1], [0], [0], [1], [0, 0, 1, 1], [], []>} : vector<16x64xbf16>, vector<64x384xbf16>, vector<16x384xf32> -> vector<16x384xf32>
    %c0_34 = arith.constant 0 : index
    %c0_35 = arith.constant 0 : index
    %94 = vector.load %arg5[%c0_34, %c0_35] : memref<16x384xf32, #tpu.memory_space<vmem>>, vector<16x384xf32>
    %95 = arith.mulf %93, %94 : vector<16x384xf32>
    %c0_36 = arith.constant 0 : index
    %c0_37 = arith.constant 0 : index
    %96 = vector.load %arg6[%c0_36, %c0_37] : memref<16x384xf32, #tpu.memory_space<vmem>>, vector<16x384xf32>
    %97 = arith.addf %95, %96 : vector<16x384xf32>
    %cst_38 = arith.constant 0.000000e+00 : f32
    %98 = vector.broadcast %cst_38 : f32 to vector<16x384xf32>
    %99 = arith.maximumf %97, %98 : vector<16x384xf32>
    %100 = arith.truncf %99 : vector<16x384xf32> to vector<16x384xbf16>
    %c0_39 = arith.constant 0 : index
    %c0_40 = arith.constant 0 : index
    %101 = vector.load %arg4[%c0_39, %c0_40] : memref<64x384xbf16, #tpu.memory_space<vmem>>, vector<64x384xbf16>
    %cst_41 = arith.constant dense<0.000000e+00> : vector<16x64xf32>
    %102 = tpu.matmul %100, %101, %cst_41 {dimension_numbers = #tpu.dot_dimension_numbers<[1], [1], [0], [0], [0, 0, 1, 0], [], []>} : vector<16x384xbf16>, vector<64x384xbf16>, vector<16x64xf32> -> vector<16x64xf32>
    %103 = math.tanh %102 : vector<16x64xf32>
    %cst_42 = arith.constant 1.000000e+00 : f32
    %104 = vector.broadcast %cst_42 : f32 to vector<16x64xf32>
    %105 = arith.addf %104, %103 : vector<16x64xf32>
    %106 = vector.extract_strided_slice %105 {offsets = [0, 0], sizes = [4, 64], strides = [1, 1]} : vector<16x64xf32> to vector<4x64xf32>
    %107 = vector.extract_strided_slice %105 {offsets = [4, 0], sizes = [4, 64], strides = [1, 1]} : vector<16x64xf32> to vector<4x64xf32>
    %108 = arith.addf %106, %107 : vector<4x64xf32>
    %cst_43 = arith.constant 2.500000e-01 : f32
    %109 = vector.broadcast %cst_43 : f32 to vector<4x64xf32>
    %110 = arith.mulf %109, %108 : vector<4x64xf32>
    %c0_44 = arith.constant 0 : index
    %c0_45 = arith.constant 0 : index
    %c0_46 = arith.constant 0 : index
    %111 = vector.load %arg7[%c0_44, %c0_45, %c0_46] : memref<1x4x64xf32, #tpu.memory_space<vmem>>, vector<1x4x64xf32>
    %112 = vector.shape_cast %111 : vector<1x4x64xf32> to vector<4x64xf32>
    %113 = vector.shape_cast %110 : vector<4x64xf32> to vector<1x4x64xf32>
    tpu.vector_store %arg7[%c0_44, %c0_45, %c0_46], %113 {strides = array<i32>} : memref<1x4x64xf32, #tpu.memory_space<vmem>>, vector<1x4x64xf32>,
    %114 = vector.extract_strided_slice %105 {offsets = [8, 0], sizes = [8, 64], strides = [1, 1]} : vector<16x64xf32> to vector<8x64xf32>
    %cst_47 = arith.constant 5.000000e-01 : f32
    %115 = vector.broadcast %cst_47 : f32 to vector<8x64xf32>
    %116 = arith.mulf %115, %114 : vector<8x64xf32>
    %c0_48 = arith.constant 0 : index
    %c0_49 = arith.constant 0 : index
    %c0_50 = arith.constant 0 : index
    %117 = vector.load %arg8[%c0_48, %c0_49, %c0_50] : memref<1x8x64xf32, #tpu.memory_space<vmem>>, vector<1x8x64xf32>
    %118 = vector.shape_cast %117 : vector<1x8x64xf32> to vector<8x64xf32>
    %119 = vector.shape_cast %116 : vector<8x64xf32> to vector<1x8x64xf32>
    tpu.vector_store %arg8[%c0_48, %c0_49, %c0_50], %119 {strides = array<i32>} : memref<1x8x64xf32, #tpu.memory_space<vmem>>, vector<1x8x64xf32>,
    return
  }
  func.func @transform_0(%arg0: i32) -> (i32, i32, i32, i32, i32) {
    %c0_i32 = arith.constant 0 : i32
    %c0_i32_0 = arith.constant 0 : i32
    %c0_i32_1 = arith.constant 0 : i32
    %c0_i32_2 = arith.constant 0 : i32
    %c0_i32_3 = arith.constant 0 : i32
    return %arg0, %c0_i32, %c0_i32_0, %c0_i32_1, %c0_i32_2 : i32, i32, i32, i32, i32
  }
  func.func @transform_1(%arg0: i32) -> (i32, i32, i32, i32) {
    %c0_i32 = arith.constant 0 : i32
    %c0_i32_0 = arith.constant 0 : i32
    %c0_i32_1 = arith.constant 0 : i32
    %c0_i32_2 = arith.constant 0 : i32
    return %arg0, %c0_i32, %c0_i32_0, %c0_i32_1 : i32, i32, i32, i32
  }
  func.func @transform_2(%arg0: i32) -> (i32, i32) {
    %c0_i32 = arith.constant 0 : i32
    %c0_i32_0 = arith.constant 0 : i32
    %c0_i32_1 = arith.constant 0 : i32
    return %c0_i32, %c0_i32_0 : i32, i32
  }
  func.func @transform_3(%arg0: i32) -> (i32, i32) {
    %c0_i32 = arith.constant 0 : i32
    %c0_i32_0 = arith.constant 0 : i32
    %c0_i32_1 = arith.constant 0 : i32
    return %c0_i32, %c0_i32_0 : i32, i32
  }
  func.func @transform_4(%arg0: i32) -> (i32, i32) {
    %c0_i32 = arith.constant 0 : i32
    %c0_i32_0 = arith.constant 0 : i32
    %c0_i32_1 = arith.constant 0 : i32
    return %c0_i32, %c0_i32_0 : i32, i32
  }
  func.func @transform_5(%arg0: i32) -> (i32, i32) {
    %c0_i32 = arith.constant 0 : i32
    %c0_i32_0 = arith.constant 0 : i32
    %c0_i32_1 = arith.constant 0 : i32
    return %c0_i32, %c0_i32_0 : i32, i32
  }
  func.func @transform_6(%arg0: i32) -> (i32, i32, i32) {
    %c0_i32 = arith.constant 0 : i32
    %c0_i32_0 = arith.constant 0 : i32
    %c0_i32_1 = arith.constant 0 : i32
    return %arg0, %c0_i32, %c0_i32_0 : i32, i32, i32
  }
  func.func @transform_7(%arg0: i32) -> (i32, i32, i32) {
    %c0_i32 = arith.constant 0 : i32
    %c0_i32_0 = arith.constant 0 : i32
    %c0_i32_1 = arith.constant 0 : i32
    return %arg0, %c0_i32, %c0_i32_0 : i32, i32, i32
  }
}

</mosaic_0001>

<llo_original>
// kernel: tdm_forward.1
$region0: #{tdm_forward.1}
  #allocation0 [shape = 'u32[]', space=smem, size = 0x4, offset = 0x4, fixed_abs, tag = 'smem constant byte address 0x4 - core index']
  #allocation1 [shape = 'u32[144,128]{1,0:T(1,128)}', space=vmem, size = 0x12000, scoped, tag = 'internal scratch']
  %s0 = inlined_call_operand.vmem [shape: f32[4,2,4,16,64], index: 0, kind: input, shape index: {}]
  %s1 = inlined_call_operand.vmem [shape: f32[4,8,16,64], index: 1, kind: input, shape index: {}]
  %s2 = inlined_call_operand.vmem [shape: bf16[64,384], index: 2, kind: input, shape index: {}]
  %s3 = inlined_call_operand.vmem [shape: bf16[64,384], index: 3, kind: input, shape index: {}]
  %s4 = inlined_call_operand.vmem [shape: f32[16,384], index: 4, kind: input, shape index: {}]
  %s5 = inlined_call_operand.vmem [shape: f32[16,384], index: 5, kind: input, shape index: {}]
  %s6 = inlined_call_operand.vmem [shape: f32[4,4,64], index: 6, kind: output, shape index: {0}]
  %s7 = inlined_call_operand.vmem [shape: f32[4,8,64], index: 7, kind: output, shape index: {1}]
  %8 = xla_tuple %s6, %s7
  %s9 = sld [smem:[#allocation0]]
  $region65: #{tdm_forward.1} parent=0
    _
  %s11 = ssub.s32 1, %s9
  %s12 = scalar_select 0, %s11, %s9
  loop: start=0, step=1, limit=6
  $region2: #{tdm_forward.1} parent=0 // loop_pre_header
    _
  $region3: #{tdm_forward.1} parent=0 // loop_header
    %s14 = sphi 0, %s18
    %p15 = scmp.ge.s32.totalorder %s14, 6
    %s24 = sphi 0, %s26
    %s27 = sphi 0, %s24
    %s28 = sphi 0, %s27
    %s44 = sphi 0, %s28
    %s50 = sphi 0, %s52
    %s53 = sphi 0, %s50
    %s54 = sphi 0, %s53
    %s70 = sphi 0, %s54
    %s74 = sphi 0, %s74
    %s76 = sphi 0, %s74
    %s77 = sphi 0, %s76
    %s91 = sphi 0, %s77
    %s95 = sphi 0, %s95
    %s97 = sphi 0, %s95
    %s98 = sphi 0, %s97
    %s112 = sphi 0, %s98
    %s116 = sphi 0, %s116
    %s118 = sphi 0, %s116
    %s119 = sphi 0, %s118
    %s133 = sphi 0, %s119
    %s137 = sphi 0, %s137
    %s139 = sphi 0, %s137
    %s140 = sphi 0, %s139
    %s154 = sphi 0, %s140
    %s160 = sphi 0, %s162
    %s163 = sphi 0, %s160
    %s164 = sphi 0, %s163
    %s180 = sphi 0, %s164
    %s186 = sphi 0, %s188
    %s189 = sphi 0, %s186
    %s190 = sphi 0, %s189
    %s206 = sphi 0, %s190
  $region4: #{tdm_forward.1} parent=0 // loop_header_branch
    %17 = sbr.rel (%p15) target = $region8
  $region5: #{tdm_forward.1} parent=0 // loop_body
    %s19 = ssub.s32 %s14, 1
    %s20 = ssub.s32 %s14, 2
    %s21 = sadd.s32 %s14, 1
    %s22 = ssub.s32 %s14, %s21
    %p23 = scmp.eq.s32.totalorder %s22, 0
    %s25 = sadd.s32 %s24, 1
    %s26 = scalar_select %p23, %s24, %s25
    %p29 = pneg %p23
    %p30 = scmp.eq.s32.totalorder %s14, 3
    %p31 = por %p29, %p30
    %p32 = scmp.ne.s32.totalorder %s24, %s27
    %p33 = scmp.eq.s32.totalorder %s14, 0
    %p34 = por %p32, %p33
    %p35 = scmp.ne.s32.totalorder %s24, %s27
    %p36 = scmp.eq.s32.totalorder %s19, 3
    %p37 = por %p35, %p36
    %p38 = scmp.ne.s32.totalorder %s27, %s28
    %p39 = scmp.eq.s32.totalorder %s19, 0
    %p40 = por %p38, %p39
    %p41 = scmp.ne.s32.totalorder %s27, %s28
    %p42 = scmp.eq.s32.totalorder %s20, 3
    %p43 = por %p41, %p42
    %p45 = scmp.ne.s32.totalorder %s28, %s44
    %p46 = scmp.eq.s32.totalorder %s20, 0
    %p47 = por %p45, %p46
    %s48 = ssub.s32 %s14, %s21
    %p49 = scmp.eq.s32.totalorder %s48, 0
    %s51 = sadd.s32 %s50, 1
    %s52 = scalar_select %p49, %s50, %s51
    %p55 = pneg %p49
    %p56 = scmp.eq.s32.totalorder %s14, 3
    %p57 = por %p55, %p56
    %p58 = scmp.ne.s32.totalorder %s50, %s53
    %p59 = scmp.eq.s32.totalorder %s14, 0
    %p60 = por %p58, %p59
    %p61 = scmp.ne.s32.totalorder %s50, %s53
    %p62 = scmp.eq.s32.totalorder %s19, 3
    %p63 = por %p61, %p62
    %p64 = scmp.ne.s32.totalorder %s53, %s54
    %p65 = scmp.eq.s32.totalorder %s19, 0
    %p66 = por %p64, %p65
    %p67 = scmp.ne.s32.totalorder %s53, %s54
    %p68 = scmp.eq.s32.totalorder %s20, 3
    %p69 = por %p67, %p68
    %p71 = scmp.ne.s32.totalorder %s54, %s70
    %p72 = scmp.eq.s32.totalorder %s20, 0
    %p73 = por %p71, %p72
    %s75 = sadd.s32 %s74, 1
    %p78 = scmp.eq.s32.totalorder %s14, 3
    %p79 = scmp.ne.s32.totalorder %s74, %s76
    %p80 = scmp.eq.s32.totalorder %s14, 0
    %p81 = por %p79, %p80
    %p82 = scmp.ne.s32.totalorder %s74, %s76
    %p83 = scmp.eq.s32.totalorder %s19, 3
    %p84 = por %p82, %p83
    %p85 = scmp.ne.s32.totalorder %s76, %s77
    %p86 = scmp.eq.s32.totalorder %s19, 0
    %p87 = por %p85, %p86
    %p88 = scmp.ne.s32.totalorder %s76, %s77
    %p89 = scmp.eq.s32.totalorder %s20, 3
    %p90 = por %p88, %p89
    %p92 = scmp.ne.s32.totalorder %s77, %s91
    %p93 = scmp.eq.s32.totalorder %s20, 0
    %p94 = por %p92, %p93
    %s96 = sadd.s32 %s95, 1
    %p99 = scmp.eq.s32.totalorder %s14, 3
    %p100 = scmp.ne.s32.totalorder %s95, %s97
    %p101 = scmp.eq.s32.totalorder %s14, 0
    %p102 = por %p100, %p101
    %p103 = scmp.ne.s32.totalorder %s95, %s97
    %p104 = scmp.eq.s32.totalorder %s19, 3
    %p105 = por %p103, %p104
    %p106 = scmp.ne.s32.totalorder %s97, %s98
    %p107 = scmp.eq.s32.totalorder %s19, 0
    %p108 = por %p106, %p107
    %p109 = scmp.ne.s32.totalorder %s97, %s98
    %p110 = scmp.eq.s32.totalorder %s20, 3
    %p111 = por %p109, %p110
    %p113 = scmp.ne.s32.totalorder %s98, %s112
    %p114 = scmp.eq.s32.totalorder %s20, 0
    %p115 = por %p113, %p114
    %s117 = sadd.s32 %s116, 1
    %p120 = scmp.eq.s32.totalorder %s14, 3
    %p121 = scmp.ne.s32.totalorder %s116, %s118
    %p122 = scmp.eq.s32.totalorder %s14, 0
    %p123 = por %p121, %p122
    %p124 = scmp.ne.s32.totalorder %s116, %s118
    %p125 = scmp.eq.s32.totalorder %s19, 3
    %p126 = por %p124, %p125
    %p127 = scmp.ne.s32.totalorder %s118, %s119
    %p128 = scmp.eq.s32.totalorder %s19, 0
    %p129 = por %p127, %p128
    %p130 = scmp.ne.s32.totalorder %s118, %s119
    %p131 = scmp.eq.s32.totalorder %s20, 3
    %p132 = por %p130, %p131
    %p134 = scmp.ne.s32.totalorder %s119, %s133
    %p135 = scmp.eq.s32.totalorder %s20, 0
    %p136 = por %p134, %p135
    %s138 = sadd.s32 %s137, 1
    %p141 = scmp.eq.s32.totalorder %s14, 3
    %p142 = scmp.ne.s32.totalorder %s137, %s139
    %p143 = scmp.eq.s32.totalorder %s14, 0
    %p144 = por %p142, %p143
    %p145 = scmp.ne.s32.totalorder %s137, %s139
    %p146 = scmp.eq.s32.totalorder %s19, 3
    %p147 = por %p145, %p146
    %p148 = scmp.ne.s32.totalorder %s139, %s140
    %p149 = scmp.eq.s32.totalorder %s19, 0
    %p150 = por %p148, %p149
    %p151 = scmp.ne.s32.totalorder %s139, %s140
    %p152 = scmp.eq.s32.totalorder %s20, 3
    %p153 = por %p151, %p152
    %p155 = scmp.ne.s32.totalorder %s140, %s154
    %p156 = scmp.eq.s32.totalorder %s20, 0
    %p157 = por %p155, %p156
    %s158 = ssub.s32 %s14, %s21
    %p159 = scmp.eq.s32.totalorder %s158, 0
    %s161 = sadd.s32 %s160, 1
    %s162 = scalar_select %p159, %s160, %s161
    %p165 = pneg %p159
    %p166 = scmp.eq.s32.totalorder %s14, 3
    %p167 = por %p165, %p166
    %p168 = scmp.ne.s32.totalorder %s160, %s163
    %p169 = scmp.eq.s32.totalorder %s14, 0
    %p170 = por %p168, %p169
    %p171 = scmp.ne.s32.totalorder %s160, %s163
    %p172 = scmp.eq.s32.totalorder %s19, 3
    %p173 = por %p171, %p172
    %p174 = scmp.ne.s32.totalorder %s163, %s164
    %p175 = scmp.eq.s32.totalorder %s19, 0
    %p176 = por %p174, %p175
    %p177 = scmp.ne.s32.totalorder %s163, %s164
    %p178 = scmp.eq.s32.totalorder %s20, 3
    %p179 = por %p177, %p178
    %p181 = scmp.ne.s32.totalorder %s164, %s180
    %p182 = scmp.eq.s32.totalorder %s20, 0
    %p183 = por %p181, %p182
    %s184 = ssub.s32 %s14, %s21
    %p185 = scmp.eq.s32.totalorder %s184, 0
    %s187 = sadd.s32 %s186, 1
    %s188 = scalar_select %p185, %s186, %s187
    %p191 = pneg %p185
    %p192 = scmp.eq.s32.totalorder %s14, 3
    %p193 = por %p191, %p192
    %p194 = scmp.ne.s32.totalorder %s186, %s189
    %p195 = scmp.eq.s32.totalorder %s14, 0
    %p196 = por %p194, %p195
    %p197 = scmp.ne.s32.totalorder %s186, %s189
    %p198 = scmp.eq.s32.totalorder %s19, 3
    %p199 = por %p197, %p198
    %p200 = scmp.ne.s32.totalorder %s189, %s190
    %p201 = scmp.eq.s32.totalorder %s19, 0
    %p202 = por %p200, %p201
    %p203 = scmp.ne.s32.totalorder %s189, %s190
    %p204 = scmp.eq.s32.totalorder %s20, 3
    %p205 = por %p203, %p204
    %p207 = scmp.ne.s32.totalorder %s190, %s206
    %p208 = scmp.eq.s32.totalorder %s20, 0
    %p209 = por %p207, %p208
    %p210 = scmp.le.s32.totalorder 1, %s14
    %p211 = scmp.lt.s32.totalorder %s14, 5
    %p212 = pnand %p210, %p211
    %p213 = pneg %p212
    // Predicated region
    $region9: #{tdm_forward.1} parent=5 // pred_check
      _
    $region10: #{tdm_forward.1} parent=5 // pred_check_branch
      %215 = sbr.rel (%p212) target = $region12
    $region11: #{tdm_forward.1} parent=5 // pred_region
      %s216 = ssub.s32 %s14, 1
      // Predicated region
      $region13: #{tdm_forward.1} parent=11 // pred_check
        %p217 = pneg %p87
      $region14: #{tdm_forward.1} parent=11 // pred_check_branch
        %219 = sbr.rel (%p217) target = $region16
      $region15: #{tdm_forward.1} parent=11 // pred_region
        _
      $region16: #{tdm_forward.1} parent=11 // pred_fallthru
        _
      // Predicated region
      $region17: #{tdm_forward.1} parent=11 // pred_check
        %p220 = pneg %p108
      $region18: #{tdm_forward.1} parent=11 // pred_check_branch
        %222 = sbr.rel (%p220) target = $region20
      $region19: #{tdm_forward.1} parent=11 // pred_region
        _
      $region20: #{tdm_forward.1} parent=11 // pred_fallthru
        _
      // Predicated region
      $region21: #{tdm_forward.1} parent=11 // pred_check
        %p223 = pneg %p129
      $region22: #{tdm_forward.1} parent=11 // pred_check_branch
        %225 = sbr.rel (%p223) target = $region24
      $region23: #{tdm_forward.1} parent=11 // pred_region
        _
      $region24: #{tdm_forward.1} parent=11 // pred_fallthru
        _
      // Predicated region
      $region25: #{tdm_forward.1} parent=11 // pred_check
        %p226 = pneg %p150
      $region26: #{tdm_forward.1} parent=11 // pred_check_branch
        %228 = sbr.rel (%p226) target = $region28
      $region27: #{tdm_forward.1} parent=11 // pred_region
        _
      $region28: #{tdm_forward.1} parent=11 // pred_fallthru
        _
    $region12: #{tdm_forward.1} parent=5 // pred_fallthru
      _
    %p229 = scmp.lt.s32.totalorder %s14, 4
    // Predicated region
    $region29: #{tdm_forward.1} parent=5 // pred_check
      %p230 = pneg %p229
    $region30: #{tdm_forward.1} parent=5 // pred_check_branch
      %232 = sbr.rel (%p230) target = $region32
    $region31: #{tdm_forward.1} parent=5 // pred_region
      // Predicated region
      $region33: #{tdm_forward.1} parent=31 // pred_check
        %p233 = pneg %p34
      $region34: #{tdm_forward.1} parent=31 // pred_check_branch
        %235 = sbr.rel (%p233) target = $region36
      $region35: #{tdm_forward.1} parent=31 // pred_region
        %p236 = scmp.lt.s32.totalorder %s14, 3
        %s237 = scalar_select %p236, %s14, 3
        %s238 = smul.addr %s237, 16
        %s239 = smul.addr %s238, 8
        %s240 = scalar_lea.vmem %s0, %s239
      $region36: #{tdm_forward.1} parent=31 // pred_fallthru
        _
      // Predicated region
      $region37: #{tdm_forward.1} parent=31 // pred_check
        %p241 = pneg %p60
      $region38: #{tdm_forward.1} parent=31 // pred_check_branch
        %243 = sbr.rel (%p241) target = $region40
      $region39: #{tdm_forward.1} parent=31 // pred_region
        %p244 = scmp.lt.s32.totalorder %s14, 3
        %s245 = scalar_select %p244, %s14, 3
        %s246 = smul.addr %s245, 16
        %s247 = smul.addr %s246, 8
        %s248 = scalar_lea.vmem %s1, %s247
      $region40: #{tdm_forward.1} parent=31 // pred_fallthru
        _
    $region32: #{tdm_forward.1} parent=5 // pred_fallthru
      _
    %p249 = scmp.le.s32.totalorder 1, %s14
    %p250 = scmp.lt.s32.totalorder %s14, 5
    %p251 = pnand %p249, %p250
    %p252 = pneg %p251
    // Predicated region
    $region41: #{tdm_forward.1} parent=5 // pred_check
      _
    $region42: #{tdm_forward.1} parent=5 // pred_check_branch
      %254 = sbr.rel (%p251) target = $region44
    $region43: #{tdm_forward.1} parent=5 // pred_region
      %s255 = ssub.s32 %s14, 1
      %p256 = scmp.lt.s32.totalorder %s19, 3
      %s257 = scalar_select %p256, %s19, 3
      %s258 = smul.addr %s257, 16
      %s259 = smul.addr %s258, 8
      %s260 = scalar_lea.vmem %s0, %s259
      %p261 = pneg %p40
      %p262 = pneg %p37
      %p263 = scmp.lt.s32.totalorder %s19, 3
      %s264 = scalar_select %p263, %s19, 3
      %s265 = smul.addr %s264, 16
      %s266 = smul.addr %s265, 8
      %s267 = scalar_lea.vmem %s1, %s266
      %p268 = pneg %p66
      %p269 = pneg %p63
      %p270 = pneg %p87
      %p271 = pneg %p84
      %p272 = pneg %p108
      %p273 = pneg %p105
      %p274 = pneg %p129
      %p275 = pneg %p126
      %p276 = pneg %p150
      %p277 = pneg %p147
      %p278 = pneg %p176
      %p279 = pneg %p173
      %p280 = scmp.lt.s32.totalorder %s19, 3
      %s281 = scalar_select %p280, %s19, 3
      %s282 = smul.addr %s281, 4
      %s283 = scalar_lea.vmem %s6, %s282
      %p284 = pneg %p202
      %p285 = pneg %p199
      %p286 = scmp.lt.s32.totalorder %s19, 3
      %s287 = scalar_select %p286, %s19, 3
      %s288 = smul.addr %s287, 8
      %s289 = scalar_lea.vmem %s7, %s288
      %p290 = scmp.lt.s32.totalorder %s19, 3
      %s291 = scalar_select %p290, %s19, 3
      %s292 = smul.addr %s291, 16
      %s293 = smul.addr %s292, 8
      %s294 = scalar_lea.vmem %s0, %s293
      %p295 = scmp.lt.s32.totalorder %s19, 3
      %s296 = scalar_select %p295, %s19, 3
      %s297 = smul.addr %s296, 16
      %s298 = smul.addr %s297, 8
      %s299 = scalar_lea.vmem %s1, %s298
      %p300 = scmp.lt.s32.totalorder %s19, 3
      %s301 = scalar_select %p300, %s19, 3
      %s302 = smul.addr %s301, 4
      %s303 = scalar_lea.vmem %s6, %s302
      %p304 = scmp.lt.s32.totalorder %s19, 3
      %s305 = scalar_select %p304, %s19, 3
      %s306 = smul.addr %s305, 8
      %s307 = scalar_lea.vmem %s7, %s306
      %v309 = vld [vmem:[%s294] sm:$0xff]
      %v310 = vld [vmem:[%s294 + $0x8] sm:$0xff]
      %v311 = vld [vmem:[%s294 + $0x10] sm:$0xff]
      %v312 = vld [vmem:[%s294 + $0x18] sm:$0xff]
      %v313 = vld [vmem:[%s294 + $0x20] sm:$0xff]
      %v314 = vld [vmem:[%s294 + $0x28] sm:$0xff]
      %v315 = vld [vmem:[%s294 + $0x30] sm:$0xff]
      %v316 = vld [vmem:[%s294 + $0x38] sm:$0xff]
      %v317 = vld [vmem:[%s294 + $0x40] sm:$0xff]
      %v318 = vld [vmem:[%s294 + $0x48] sm:$0xff]
      %v319 = vld [vmem:[%s294 + $0x50] sm:$0xff]
      %v320 = vld [vmem:[%s294 + $0x58] sm:$0xff]
      %v321 = vld [vmem:[%s294 + $0x60] sm:$0xff]
      %v322 = vld [vmem:[%s294 + $0x68] sm:$0xff]
      %v323 = vld [vmem:[%s294 + $0x70] sm:$0xff]
      %v324 = vld [vmem:[%s294 + $0x78] sm:$0xff]
      %vm325 = vcmask 523264
      %v326 = vsel %vm325, %v309, 0.0
      %v327 = vsel %vm325, %v317, 0.0
      %v328 = vadd.f32 %v326, %v327
      %v329 = vsel %vm325, %v310, 0.0
      %v330 = vsel %vm325, %v318, 0.0
      %v331 = vadd.f32 %v329, %v330
      %v332 = vsel %vm325, %v311, 0.0
      %v333 = vsel %vm325, %v319, 0.0
      %v334 = vadd.f32 %v332, %v333
      %v335 = vsel %vm325, %v312, 0.0
      %v336 = vsel %vm325, %v320, 0.0
      %v337 = vadd.f32 %v335, %v336
      %v338 = vsel %vm325, %v313, 0.0
      %v339 = vsel %vm325, %v321, 0.0
      %v340 = vadd.f32 %v338, %v339
      %v341 = vsel %vm325, %v314, 0.0
      %v342 = vsel %vm325, %v322, 0.0
      %v343 = vadd.f32 %v341, %v342
      %v344 = vsel %vm325, %v315, 0.0
      %v345 = vsel %vm325, %v323, 0.0
      %v346 = vadd.f32 %v344, %v345
      %v347 = vsel %vm325, %v316, 0.0
      %v348 = vsel %vm325, %v324, 0.0
      %v349 = vadd.f32 %v347, %v348
      %v350 = vrcp.pop 2.0
      %v351 = vmul.f32 %v328, %v350
      %v352 = vmul.f32 %v331, %v350
      %v353 = vmul.f32 %v334, %v350
      %v354 = vmul.f32 %v337, %v350
      %v355 = vmul.f32 %v340, %v350
      %v356 = vmul.f32 %v343, %v350
      %v357 = vmul.f32 %v346, %v350
      %v358 = vmul.f32 %v349, %v350
      %v359 = vld [vmem:[%s299] sm:$0xff]
      %v360 = vld [vmem:[%s299 + $0x8] sm:$0xff]
      %v361 = vld [vmem:[%s299 + $0x10] sm:$0xff]
      %v362 = vld [vmem:[%s299 + $0x18] sm:$0xff]
      %v363 = vld [vmem:[%s299 + $0x20] sm:$0xff]
      %v364 = vld [vmem:[%s299 + $0x28] sm:$0xff]
      %v365 = vld [vmem:[%s299 + $0x30] sm:$0xff]
      %v366 = vld [vmem:[%s299 + $0x38] sm:$0xff]
      %v367 = vld [vmem:[%s299 + $0x40] sm:$0xff]
      %v368 = vld [vmem:[%s299 + $0x48] sm:$0xff]
      %v369 = vld [vmem:[%s299 + $0x50] sm:$0xff]
      %v370 = vld [vmem:[%s299 + $0x58] sm:$0xff]
      %v371 = vld [vmem:[%s299 + $0x60] sm:$0xff]
      %v372 = vld [vmem:[%s299 + $0x68] sm:$0xff]
      %v373 = vld [vmem:[%s299 + $0x70] sm:$0xff]
      %v374 = vld [vmem:[%s299 + $0x78] sm:$0xff]
      %v375 = vsel %vm325, %v351, 0.0
      %376 = vadd.xlane.f32.xlu0 %v375
      %v377 = vpop.xlane.xlu0 %376
      %v378 = vsel %vm325, %v352, 0.0
      %379 = vadd.xlane.f32.xlu0 %v378
      %v380 = vpop.xlane.xlu0 %379
      %v381 = vsel %vm325, %v353, 0.0
      %382 = vadd.xlane.f32.xlu0 %v381
      %v383 = vpop.xlane.xlu0 %382
      %v384 = vsel %vm325, %v354, 0.0
      %385 = vadd.xlane.f32.xlu0 %v384
      %v386 = vpop.xlane.xlu0 %385
      %v387 = vsel %vm325, %v355, 0.0
      %388 = vadd.xlane.f32.xlu0 %v387
      %v389 = vpop.xlane.xlu0 %388
      %v390 = vsel %vm325, %v356, 0.0
      %391 = vadd.xlane.f32.xlu0 %v390
      %v392 = vpop.xlane.xlu0 %391
      %v393 = vsel %vm325, %v357, 0.0
      %394 = vadd.xlane.f32.xlu0 %v393
      %v395 = vpop.xlane.xlu0 %394
      %v396 = vsel %vm325, %v358, 0.0
      %397 = vadd.xlane.f32.xlu0 %v396
      %v398 = vpop.xlane.xlu0 %397
      %v399 = vsel %vm325, %v359, 0.0
      %400 = vadd.xlane.f32.xlu0 %v399
      %v401 = vpop.xlane.xlu0 %400
      %v402 = vsel %vm325, %v360, 0.0
      %403 = vadd.xlane.f32.xlu0 %v402
      %v404 = vpop.xlane.xlu0 %403
      %v405 = vsel %vm325, %v361, 0.0
      %406 = vadd.xlane.f32.xlu0 %v405
      %v407 = vpop.xlane.xlu0 %406
      %v408 = vsel %vm325, %v362, 0.0
      %409 = vadd.xlane.f32.xlu0 %v408
      %v410 = vpop.xlane.xlu0 %409
      %v411 = vsel %vm325, %v363, 0.0
      %412 = vadd.xlane.f32.xlu0 %v411
      %v413 = vpop.xlane.xlu0 %412
      %v414 = vsel %vm325, %v364, 0.0
      %415 = vadd.xlane.f32.xlu0 %v414
      %v416 = vpop.xlane.xlu0 %415
      %v417 = vsel %vm325, %v365, 0.0
      %418 = vadd.xlane.f32.xlu0 %v417
      %v419 = vpop.xlane.xlu0 %418
      %v420 = vsel %vm325, %v366, 0.0
      %421 = vadd.xlane.f32.xlu0 %v420
      %v422 = vpop.xlane.xlu0 %421
      %v423 = vsel %vm325, %v367, 0.0
      %424 = vadd.xlane.f32.xlu0 %v423
      %v425 = vpop.xlane.xlu0 %424
      %v426 = vsel %vm325, %v368, 0.0
      %427 = vadd.xlane.f32.xlu0 %v426
      %v428 = vpop.xlane.xlu0 %427
      %v429 = vsel %vm325, %v369, 0.0
      %430 = vadd.xlane.f32.xlu0 %v429
      %v431 = vpop.xlane.xlu0 %430
      %v432 = vsel %vm325, %v370, 0.0
      %433 = vadd.xlane.f32.xlu0 %v432
      %v434 = vpop.xlane.xlu0 %433
      %v435 = vsel %vm325, %v371, 0.0
      %436 = vadd.xlane.f32.xlu0 %v435
      %v437 = vpop.xlane.xlu0 %436
      %v438 = vsel %vm325, %v372, 0.0
      %439 = vadd.xlane.f32.xlu0 %v438
      %v440 = vpop.xlane.xlu0 %439
      %v441 = vsel %vm325, %v373, 0.0
      %442 = vadd.xlane.f32.xlu0 %v441
      %v443 = vpop.xlane.xlu0 %442
      %v444 = vsel %vm325, %v374, 0.0
      %445 = vadd.xlane.f32.xlu0 %v444
      %v446 = vpop.xlane.xlu0 %445
      %v447 = vrcp.pop 64.0
      %v448 = vmul.f32 %v377, %v447
      %v449 = vmul.f32 %v380, %v447
      %v450 = vmul.f32 %v383, %v447
      %v451 = vmul.f32 %v386, %v447
      %v452 = vmul.f32 %v389, %v447
      %v453 = vmul.f32 %v392, %v447
      %v454 = vmul.f32 %v395, %v447
      %v455 = vmul.f32 %v398, %v447
      %v456 = vmul.f32 %v401, %v447
      %v457 = vmul.f32 %v404, %v447
      %v458 = vmul.f32 %v407, %v447
      %v459 = vmul.f32 %v410, %v447
      %v460 = vmul.f32 %v413, %v447
      %v461 = vmul.f32 %v416, %v447
      %v462 = vmul.f32 %v419, %v447
      %v463 = vmul.f32 %v422, %v447
      %v464 = vmul.f32 %v425, %v447
      %v465 = vmul.f32 %v428, %v447
      %v466 = vmul.f32 %v431, %v447
      %v467 = vmul.f32 %v434, %v447
      %v468 = vmul.f32 %v437, %v447
      %v469 = vmul.f32 %v440, %v447
      %v470 = vmul.f32 %v443, %v447
      %v471 = vmul.f32 %v446, %v447
      %v472 = vsub.f32 %v359, %v456
      %v473 = vsub.f32 %v360, %v457
      %v474 = vsub.f32 %v361, %v458
      %v475 = vsub.f32 %v362, %v459
      %v476 = vsub.f32 %v363, %v460
      %v477 = vsub.f32 %v364, %v461
      %v478 = vsub.f32 %v365, %v462
      %v479 = vsub.f32 %v366, %v463
      %v480 = vsub.f32 %v367, %v464
      %v481 = vsub.f32 %v368, %v465
      %v482 = vsub.f32 %v369, %v466
      %v483 = vsub.f32 %v370, %v467
      %v484 = vsub.f32 %v371, %v468
      %v485 = vsub.f32 %v372, %v469
      %v486 = vsub.f32 %v373, %v470
      %v487 = vsub.f32 %v374, %v471
      %v488 = vmul.f32 %v472, %v472
      %v489 = vmul.f32 %v473, %v473
      %v490 = vmul.f32 %v474, %v474
      %v491 = vmul.f32 %v475, %v475
      %v492 = vmul.f32 %v476, %v476
      %v493 = vmul.f32 %v477, %v477
      %v494 = vmul.f32 %v478, %v478
      %v495 = vmul.f32 %v479, %v479
      %v496 = vmul.f32 %v480, %v480
      %v497 = vmul.f32 %v481, %v481
      %v498 = vmul.f32 %v482, %v482
      %v499 = vmul.f32 %v483, %v483
      %v500 = vmul.f32 %v484, %v484
      %v501 = vmul.f32 %v485, %v485
      %v502 = vmul.f32 %v486, %v486
      %v503 = vmul.f32 %v487, %v487
      %v504 = vsel %vm325, %v488, 0.0
      %v505 = vsel %vm325, %v489, 0.0
      %v506 = vadd.f32 %v504, %v505
      %v507 = vrot.slane %v506, 4
      %v508 = vadd.f32 %v506, %v507
      %v509 = vrot.slane %v508, 2
      %v510 = vadd.f32 %v508, %v509
      %v511 = vrot.slane %v510, 1
      %v512 = vadd.f32 %v510, %v511
      %v513 = vsel %vm325, %v490, 0.0
      %v514 = vsel %vm325, %v491, 0.0
      %v515 = vadd.f32 %v513, %v514
      %v516 = vrot.slane %v515, 4
      %v517 = vadd.f32 %v515, %v516
      %v518 = vrot.slane %v517, 2
      %v519 = vadd.f32 %v517, %v518
      %v520 = vrot.slane %v519, 1
      %v521 = vadd.f32 %v519, %v520
      %v522 = vsel %vm325, %v492, 0.0
      %v523 = vsel %vm325, %v493, 0.0
      %v524 = vadd.f32 %v522, %v523
      %v525 = vrot.slane %v524, 4
      %v526 = vadd.f32 %v524, %v525
      %v527 = vrot.slane %v526, 2
      %v528 = vadd.f32 %v526, %v527
      %v529 = vrot.slane %v528, 1
      %v530 = vadd.f32 %v528, %v529
      %v531 = vsel %vm325, %v494, 0.0
      %v532 = vsel %vm325, %v495, 0.0
      %v533 = vadd.f32 %v531, %v532
      %v534 = vrot.slane %v533, 4
      %v535 = vadd.f32 %v533, %v534
      %v536 = vrot.slane %v535, 2
      %v537 = vadd.f32 %v535, %v536
      %v538 = vrot.slane %v537, 1
      %v539 = vadd.f32 %v537, %v538
      %v540 = vsel %vm325, %v496, 0.0
      %v541 = vsel %vm325, %v497, 0.0
      %v542 = vadd.f32 %v540, %v541
      %v543 = vrot.slane %v542, 4
      %v544 = vadd.f32 %v542, %v543
      %v545 = vrot.slane %v544, 2
      %v546 = vadd.f32 %v544, %v545
      %v547 = vrot.slane %v546, 1
      %v548 = vadd.f32 %v546, %v547
      %v549 = vsel %vm325, %v498, 0.0
      %v550 = vsel %vm325, %v499, 0.0
      %v551 = vadd.f32 %v549, %v550
      %v552 = vrot.slane %v551, 4
      %v553 = vadd.f32 %v551, %v552
      %v554 = vrot.slane %v553, 2
      %v555 = vadd.f32 %v553, %v554
      %v556 = vrot.slane %v555, 1
      %v557 = vadd.f32 %v555, %v556
      %v558 = vsel %vm325, %v500, 0.0
      %v559 = vsel %vm325, %v501, 0.0
      %v560 = vadd.f32 %v558, %v559
      %v561 = vrot.slane %v560, 4
      %v562 = vadd.f32 %v560, %v561
      %v563 = vrot.slane %v562, 2
      %v564 = vadd.f32 %v562, %v563
      %v565 = vrot.slane %v564, 1
      %v566 = vadd.f32 %v564, %v565
      %v567 = vsel %vm325, %v502, 0.0
      %v568 = vsel %vm325, %v503, 0.0
      %v569 = vadd.f32 %v567, %v568
      %v570 = vrot.slane %v569, 4
      %v571 = vadd.f32 %v569, %v570
      %v572 = vrot.slane %v571, 2
      %v573 = vadd.f32 %v571, %v572
      %v574 = vrot.slane %v573, 1
      %v575 = vadd.f32 %v573, %v574
      %v576 = vmul.f32 %v512, 0.0625
      %v577 = vmul.f32 %v521, 0.0625
      %v578 = vmul.f32 %v530, 0.0625
      %v579 = vmul.f32 %v539, 0.0625
      %v580 = vmul.f32 %v548, 0.0625
      %v581 = vmul.f32 %v557, 0.0625
      %v582 = vmul.f32 %v566, 0.0625
      %v583 = vmul.f32 %v575, 0.0625
      %v584 = vlaneseq
      %v585 = vshrl.u32 %v584, 7
      %v586 = vsub.f32 %v351, %v448
      %v587 = vsub.f32 %v352, %v449
      %v588 = vsub.f32 %v353, %v448
      %v589 = vsub.f32 %v354, %v449
      %v590 = vsub.f32 %v355, %v448
      %v591 = vsub.f32 %v356, %v449
      %v592 = vsub.f32 %v357, %v448
      %v593 = vsub.f32 %v358, %v449
      %v594 = vmul.f32 %v586, %v586
      %v595 = vmul.f32 %v587, %v587
      %v596 = vmul.f32 %v588, %v588
      %v597 = vmul.f32 %v589, %v589
      %v598 = vmul.f32 %v590, %v590
      %v599 = vmul.f32 %v591, %v591
      %v600 = vmul.f32 %v592, %v592
      %v601 = vmul.f32 %v593, %v593
      %v602 = vsel %vm325, %v594, 0.0
      %v603 = vsel %vm325, %v595, 0.0
      %v604 = vadd.f32 %v602, %v603
      %v605 = vrot.slane %v604, 4
      %v606 = vadd.f32 %v604, %v605
      %v607 = vrot.slane %v606, 2
      %v608 = vadd.f32 %v606, %v607
      %v609 = vrot.slane %v608, 1
      %v610 = vadd.f32 %v608, %v609
      %v611 = vsel %vm325, %v596, 0.0
      %v612 = vsel %vm325, %v597, 0.0
      %v613 = vadd.f32 %v611, %v612
      %v614 = vrot.slane %v613, 4
      %v615 = vadd.f32 %v613, %v614
      %v616 = vrot.slane %v615, 2
      %v617 = vadd.f32 %v615, %v616
      %v618 = vrot.slane %v617, 1
      %v619 = vadd.f32 %v617, %v618
      %v620 = vsel %vm325, %v598, 0.0
      %v621 = vsel %vm325, %v599, 0.0
      %v622 = vadd.f32 %v620, %v621
      %v623 = vrot.slane %v622, 4
      %v624 = vadd.f32 %v622, %v623
      %v625 = vrot.slane %v624, 2
      %v626 = vadd.f32 %v624, %v625
      %v627 = vrot.slane %v626, 1
      %v628 = vadd.f32 %v626, %v627
      %v629 = vsel %vm325, %v600, 0.0
      %v630 = vsel %vm325, %v601, 0.0
      %v631 = vadd.f32 %v629, %v630
      %v632 = vrot.slane %v631, 4
      %v633 = vadd.f32 %v631, %v632
      %v634 = vrot.slane %v633, 2
      %v635 = vadd.f32 %v633, %v634
      %v636 = vrot.slane %v635, 1
      %v637 = vadd.f32 %v635, %v636
      %v638 = vmul.f32 %v610, 0.0625
      %v639 = vmul.f32 %v619, 0.0625
      %v640 = vmul.f32 %v628, 0.0625
      %v641 = vmul.f32 %v637, 0.0625
      %vm642 = vcmp.eq.s32.totalorder %v585, 0
      %vm647 = vcmask 1041409
      %v648 = vsel %vm647, %v639, %v638
      %vm649 = vcmask 1042434
      %v650 = vsel %vm649, %v640, %v648
      %vm651 = vcmask 1043459
      %v652 = vsel %vm651, %v641, %v650
      %v654 = vsel %vm642, %v652, 0.0
      %v655 = vadd.f32 %v654, 0.0
      %v656 = vsel %vm642, inf, %v652
      %v657 = vsub.f32 %v351, %v450
      %v658 = vsub.f32 %v352, %v451
      %v659 = vsub.f32 %v353, %v450
      %v660 = vsub.f32 %v354, %v451
      %v661 = vsub.f32 %v355, %v450
      %v662 = vsub.f32 %v356, %v451
      %v663 = vsub.f32 %v357, %v450
      %v664 = vsub.f32 %v358, %v451
      %v665 = vmul.f32 %v657, %v657
      %v666 = vmul.f32 %v658, %v658
      %v667 = vmul.f32 %v659, %v659
      %v668 = vmul.f32 %v660, %v660
      %v669 = vmul.f32 %v661, %v661
      %v670 = vmul.f32 %v662, %v662
      %v671 = vmul.f32 %v663, %v663
      %v672 = vmul.f32 %v664, %v664
      %v673 = vsel %vm325, %v665, 0.0
      %v674 = vsel %vm325, %v666, 0.0
      %v675 = vadd.f32 %v673, %v674
      %v676 = vrot.slane %v675, 4
      %v677 = vadd.f32 %v675, %v676
      %v678 = vrot.slane %v677, 2
      %v679 = vadd.f32 %v677, %v678
      %v680 = vrot.slane %v679, 1
      %v681 = vadd.f32 %v679, %v680
      %v682 = vsel %vm325, %v667, 0.0
      %v683 = vsel %vm325, %v668, 0.0
      %v684 = vadd.f32 %v682, %v683
      %v685 = vrot.slane %v684, 4
      %v686 = vadd.f32 %v684, %v685
      %v687 = vrot.slane %v686, 2
      %v688 = vadd.f32 %v686, %v687
      %v689 = vrot.slane %v688, 1
      %v690 = vadd.f32 %v688, %v689
      %v691 = vsel %vm325, %v669, 0.0
      %v692 = vsel %vm325, %v670, 0.0
      %v693 = vadd.f32 %v691, %v692
      %v694 = vrot.slane %v693, 4
      %v695 = vadd.f32 %v693, %v694
      %v696 = vrot.slane %v695, 2
      %v697 = vadd.f32 %v695, %v696
      %v698 = vrot.slane %v697, 1
      %v699 = vadd.f32 %v697, %v698
      %v700 = vsel %vm325, %v671, 0.0
      %v701 = vsel %vm325, %v672, 0.0
      %v702 = vadd.f32 %v700, %v701
      %v703 = vrot.slane %v702, 4
      %v704 = vadd.f32 %v702, %v703
      %v705 = vrot.slane %v704, 2
      %v706 = vadd.f32 %v704, %v705
      %v707 = vrot.slane %v706, 1
      %v708 = vadd.f32 %v706, %v707
      %v709 = vmul.f32 %v681, 0.0625
      %v710 = vmul.f32 %v690, 0.0625
      %v711 = vmul.f32 %v699, 0.0625
      %v712 = vmul.f32 %v708, 0.0625
      %vm713 = vcmp.eq.s32.totalorder %v585, 1
      %v718 = vsel %vm647, %v710, %v709
      %v719 = vsel %vm649, %v711, %v718
      %v720 = vsel %vm651, %v712, %v719
      %v722 = vsel %vm713, %v720, 0.0
      %v723 = vadd.f32 %v655, %v722
      %v724 = vsel %vm713, inf, %v720
      %v725 = vmin.f32 %v656, %v724
      %v726 = vsub.f32 %v351, %v452
      %v727 = vsub.f32 %v352, %v453
      %v728 = vsub.f32 %v353, %v452
      %v729 = vsub.f32 %v354, %v453
      %v730 = vsub.f32 %v355, %v452
      %v731 = vsub.f32 %v356, %v453
      %v732 = vsub.f32 %v357, %v452
      %v733 = vsub.f32 %v358, %v453
      %v734 = vmul.f32 %v726, %v726
      %v735 = vmul.f32 %v727, %v727
      %v736 = vmul.f32 %v728, %v728
      %v737 = vmul.f32 %v729, %v729
      %v738 = vmul.f32 %v730, %v730
      %v739 = vmul.f32 %v731, %v731
      %v740 = vmul.f32 %v732, %v732
      %v741 = vmul.f32 %v733, %v733
      %v742 = vsel %vm325, %v734, 0.0
      %v743 = vsel %vm325, %v735, 0.0
      %v744 = vadd.f32 %v742, %v743
      %v745 = vrot.slane %v744, 4
      %v746 = vadd.f32 %v744, %v745
      %v747 = vrot.slane %v746, 2
      %v748 = vadd.f32 %v746, %v747
      %v749 = vrot.slane %v748, 1
      %v750 = vadd.f32 %v748, %v749
      %v751 = vsel %vm325, %v736, 0.0
      %v752 = vsel %vm325, %v737, 0.0
      %v753 = vadd.f32 %v751, %v752
      %v754 = vrot.slane %v753, 4
      %v755 = vadd.f32 %v753, %v754
      %v756 = vrot.slane %v755, 2
      %v757 = vadd.f32 %v755, %v756
      %v758 = vrot.slane %v757, 1
      %v759 = vadd.f32 %v757, %v758
      %v760 = vsel %vm325, %v738, 0.0
      %v761 = vsel %vm325, %v739, 0.0
      %v762 = vadd.f32 %v760, %v761
      %v763 = vrot.slane %v762, 4
      %v764 = vadd.f32 %v762, %v763
      %v765 = vrot.slane %v764, 2
      %v766 = vadd.f32 %v764, %v765
      %v767 = vrot.slane %v766, 1
      %v768 = vadd.f32 %v766, %v767
      %v769 = vsel %vm325, %v740, 0.0
      %v770 = vsel %vm325, %v741, 0.0
      %v771 = vadd.f32 %v769, %v770
      %v772 = vrot.slane %v771, 4
      %v773 = vadd.f32 %v771, %v772
      %v774 = vrot.slane %v773, 2
      %v775 = vadd.f32 %v773, %v774
      %v776 = vrot.slane %v775, 1
      %v777 = vadd.f32 %v775, %v776
      %v778 = vmul.f32 %v750, 0.0625
      %v779 = vmul.f32 %v759, 0.0625
      %v780 = vmul.f32 %v768, 0.0625
      %v781 = vmul.f32 %v777, 0.0625
      %vm782 = vcmp.eq.s32.totalorder %v585, 2
      %v787 = vsel %vm647, %v779, %v778
      %v788 = vsel %vm649, %v780, %v787
      %v789 = vsel %vm651, %v781, %v788
      %v791 = vsel %vm782, %v789, 0.0
      %v792 = vadd.f32 %v723, %v791
      %v793 = vsel %vm782, inf, %v789
      %v794 = vmin.f32 %v725, %v793
      %v795 = vsub.f32 %v351, %v454
      %v796 = vsub.f32 %v352, %v455
      %v797 = vsub.f32 %v353, %v454
      %v798 = vsub.f32 %v354, %v455
      %v799 = vsub.f32 %v355, %v454
      %v800 = vsub.f32 %v356, %v455
      %v801 = vsub.f32 %v357, %v454
      %v802 = vsub.f32 %v358, %v455
      %v803 = vmul.f32 %v795, %v795
      %v804 = vmul.f32 %v796, %v796
      %v805 = vmul.f32 %v797, %v797
      %v806 = vmul.f32 %v798, %v798
      %v807 = vmul.f32 %v799, %v799
      %v808 = vmul.f32 %v800, %v800
      %v809 = vmul.f32 %v801, %v801
      %v810 = vmul.f32 %v802, %v802
      %v811 = vsel %vm325, %v803, 0.0
      %v812 = vsel %vm325, %v804, 0.0
      %v813 = vadd.f32 %v811, %v812
      %v814 = vrot.slane %v813, 4
      %v815 = vadd.f32 %v813, %v814
      %v816 = vrot.slane %v815, 2
      %v817 = vadd.f32 %v815, %v816
      %v818 = vrot.slane %v817, 1
      %v819 = vadd.f32 %v817, %v818
      %v820 = vsel %vm325, %v805, 0.0
      %v821 = vsel %vm325, %v806, 0.0
      %v822 = vadd.f32 %v820, %v821
      %v823 = vrot.slane %v822, 4
      %v824 = vadd.f32 %v822, %v823
      %v825 = vrot.slane %v824, 2
      %v826 = vadd.f32 %v824, %v825
      %v827 = vrot.slane %v826, 1
      %v828 = vadd.f32 %v826, %v827
      %v829 = vsel %vm325, %v807, 0.0
      %v830 = vsel %vm325, %v808, 0.0
      %v831 = vadd.f32 %v829, %v830
      %v832 = vrot.slane %v831, 4
      %v833 = vadd.f32 %v831, %v832
      %v834 = vrot.slane %v833, 2
      %v835 = vadd.f32 %v833, %v834
      %v836 = vrot.slane %v835, 1
      %v837 = vadd.f32 %v835, %v836
      %v838 = vsel %vm325, %v809, 0.0
      %v839 = vsel %vm325, %v810, 0.0
      %v840 = vadd.f32 %v838, %v839
      %v841 = vrot.slane %v840, 4
      %v842 = vadd.f32 %v840, %v841
      %v843 = vrot.slane %v842, 2
      %v844 = vadd.f32 %v842, %v843
      %v845 = vrot.slane %v844, 1
      %v846 = vadd.f32 %v844, %v845
      %v847 = vmul.f32 %v819, 0.0625
      %v848 = vmul.f32 %v828, 0.0625
      %v849 = vmul.f32 %v837, 0.0625
      %v850 = vmul.f32 %v846, 0.0625
      %vm851 = vcmp.eq.s32.totalorder %v585, 3
      %v856 = vsel %vm647, %v848, %v847
      %v857 = vsel %vm649, %v849, %v856
      %v858 = vsel %vm651, %v850, %v857
      %v860 = vsel %vm851, %v858, 0.0
      %v861 = vadd.f32 %v792, %v860
      %v862 = vsel %vm851, inf, %v858
      %v863 = vmin.f32 %v794, %v862
      %v865 = vrot.slane %v863, 4
      %v875 = vsel %vm647, %v577, %v576
      %v876 = vsel %vm649, %v578, %v875
      %v877 = vsel %vm651, %v579, %v876
      %vm878 = vcmask 1044484
      %v879 = vsel %vm878, %v580, %v877
      %vm880 = vcmask 1045509
      %v881 = vsel %vm880, %v581, %v879
      %vm882 = vcmask 1046534
      %v883 = vsel %vm882, %v582, %v881
      %vm884 = vcmask 1047559
      %v885 = vsel %vm884, %v583, %v883
      %vm887 = vcmask 1043456
      %v888 = vsel %vm887, %v861, %v865
      %v889 = vpack.c.bf16 %v885, %v888
      %v890 = vld [vmem:[%s2] sm:$0xff]
      %v891 = vld [vmem:[%s2 + $0x8] sm:$0xf]
      %v892 = vld [vmem:[%s2 + $0xc] sm:$0xff]
      %v893 = vld [vmem:[%s2 + $0x14] sm:$0xf]
      %v894 = vld [vmem:[%s2 + $0x18] sm:$0xff]
      %v895 = vld [vmem:[%s2 + $0x20] sm:$0xf]
      %v896 = vld [vmem:[%s2 + $0x24] sm:$0xff]
      %v897 = vld [vmem:[%s2 + $0x2c] sm:$0xf]
      %v898 = vld [vmem:[%s2 + $0x30] sm:$0xff]
      %v899 = vld [vmem:[%s2 + $0x38] sm:$0xf]
      %v900 = vld [vmem:[%s2 + $0x3c] sm:$0xff]
      %v901 = vld [vmem:[%s2 + $0x44] sm:$0xf]
      %v902 = vld [vmem:[%s2 + $0x48] sm:$0xff]
      %v903 = vld [vmem:[%s2 + $0x50] sm:$0xf]
      %v904 = vld [vmem:[%s2 + $0x54] sm:$0xff]
      %v905 = vld [vmem:[%s2 + $0x5c] sm:$0xf]
      %v922 = vunpack.c.l.b16 %v890
      %v923 = vunpack.c.h.b16 %v890
      %v924 = vunpack.c.l.b16 %v891
      %v925 = vunpack.c.l.b16 %v892
      %v926 = vunpack.c.h.b16 %v892
      %v927 = vunpack.c.l.b16 %v893
      %v928 = vunpack.c.l.b16 %v894
      %v929 = vunpack.c.h.b16 %v894
      %v930 = vunpack.c.l.b16 %v895
      %v931 = vunpack.c.l.b16 %v896
      %v932 = vunpack.c.h.b16 %v896
      %v933 = vunpack.c.l.b16 %v897
      %v934 = vunpack.c.l.b16 %v898
      %v935 = vunpack.c.h.b16 %v898
      %v936 = vunpack.c.l.b16 %v899
      %v937 = vunpack.c.l.b16 %v900
      %v938 = vunpack.c.h.b16 %v900
      %v939 = vunpack.c.l.b16 %v901
      %v940 = vunpack.c.l.b16 %v902
      %v941 = vunpack.c.h.b16 %v902
      %v942 = vunpack.c.l.b16 %v903
      %v943 = vunpack.c.l.b16 %v904
      %v944 = vunpack.c.h.b16 %v904
      %v945 = vunpack.c.l.b16 %v905
      %v946 = vpack.c.b16 %v925, %v922
      %v947 = vpack.c.b16 %v926, %v923
      %v948 = vpack.c.b16 %v927, %v924
      %v949 = vpack.c.b16 %v931, %v928
      %v950 = vpack.c.b16 %v932, %v929
      %v951 = vpack.c.b16 %v933, %v930
      %v952 = vpack.c.b16 %v937, %v934
      %v953 = vpack.c.b16 %v938, %v935
      %v954 = vpack.c.b16 %v939, %v936
      %v955 = vpack.c.b16 %v943, %v940
      %v956 = vpack.c.b16 %v944, %v941
      %v957 = vpack.c.b16 %v945, %v942
      %v971 = vsel %vm325, %v889, 0
      %973 = vmatprep.subr.bf16.mxu0 0
      %974 = vmatpush1.bf16.msra.mxu0 0
      %975 = vmatprep.subr.bf16.mxu0 0
      %976 = vmatpush1.bf16.msra.mxu0 0
      %977 = vmatprep.subr.bf16.mxu0 0
      %978 = vmatpush1.bf16.msra.mxu0 0
      %979 = vmatprep.subr.bf16.mxu0 0
      %980 = vmatpush1.bf16.msra.mxu0 0
      %981 = vmatprep.subr.bf16.mxu0 %v956
      %982 = vmatpush1.bf16.msra.mxu0 %v955
      %983 = vmatprep.subr.bf16.mxu0 %v953
      %984 = vmatpush1.bf16.msra.mxu0 %v952
      %985 = vmatprep.subr.bf16.mxu0 %v950
      %986 = vmatpush1.bf16.msra.mxu0 %v949
      %987 = vmatprep.subr.bf16.mxu0 %v947
      %988 = vmatpush1.bf16.msra.mxu0 %v946
      %989 = vmatprep.subr.bf16.mxu0 0
      %990 = vmatpush2.bf16.msra.mxu0 0
      %991 = vmatprep.subr.bf16.mxu0 0
      %992 = vmatpush2.bf16.msra.mxu0 0
      %993 = vmatprep.subr.bf16.mxu0 0
      %994 = vmatpush2.bf16.msra.mxu0 0
      %995 = vmatprep.subr.bf16.mxu0 0
      %996 = vmatpush2.bf16.msra.mxu0 0
      %997 = vmatprep.subr.bf16.mxu0 0
      %998 = vmatpush2.bf16.msra.mxu0 0
      %999 = vmatprep.subr.bf16.mxu0 0
      %1000 = vmatpush2.bf16.msra.mxu0 0
      %1001 = vmatprep.subr.bf16.mxu0 0
      %1002 = vmatpush2.bf16.msra.mxu0 0
      %1003 = vmatprep.subr.bf16.mxu0 0
      %1004 = vmatpush2.bf16.msra.mxu0 0
      %1005 = vmatprep.mubr.bf16.mxu0 0
      %1006 = vmatmul.mubr.bf16.gmra.mxu0 %v971
      %v1007 = vpop.f32.mrf.mxu0
      %v1008 = vadd.f32 0.0, %v1007
      %v1009 = vpop.f32.mrf.mxu0
      %v1010 = vadd.f32 0.0, %v1009
      %v1011 = vpop.f32.mrf.mxu0
      %v1012 = vadd.f32 0.0, %v1011
      %v1013 = vpop.f32.mrf.mxu0
      %v1014 = vadd.f32 0.0, %v1013
      %1015 = vdwg.mxu0
      %1016 = vmatprep.subr.bf16.mxu0 0
      %1017 = vmatpush1.bf16.msra.mxu0 0
      %1018 = vmatprep.subr.bf16.mxu0 0
      %1019 = vmatpush1.bf16.msra.mxu0 0
      %1020 = vmatprep.subr.bf16.mxu0 0
      %1021 = vmatpush1.bf16.msra.mxu0 0
      %1022 = vmatprep.subr.bf16.mxu0 0
      %1023 = vmatpush1.bf16.msra.mxu0 0
      %1024 = vmatprep.subr.bf16.mxu0 0
      %1025 = vmatpush1.bf16.msra.mxu0 %v957
      %1026 = vmatprep.subr.bf16.mxu0 0
      %1027 = vmatpush1.bf16.msra.mxu0 %v954
      %1028 = vmatprep.subr.bf16.mxu0 0
      %1029 = vmatpush1.bf16.msra.mxu0 %v951
      %1030 = vmatprep.subr.bf16.mxu0 0
      %1031 = vmatpush1.bf16.msra.mxu0 %v948
      %1032 = vmatprep.subr.bf16.mxu0 0
      %1033 = vmatpush2.bf16.msra.mxu0 0
      %1034 = vmatprep.subr.bf16.mxu0 0
      %1035 = vmatpush2.bf16.msra.mxu0 0
      %1036 = vmatprep.subr.bf16.mxu0 0
      %1037 = vmatpush2.bf16.msra.mxu0 0
      %1038 = vmatprep.subr.bf16.mxu0 0
      %1039 = vmatpush2.bf16.msra.mxu0 0
      %1040 = vmatprep.subr.bf16.mxu0 0
      %1041 = vmatpush2.bf16.msra.mxu0 0
      %1042 = vmatprep.subr.bf16.mxu0 0
      %1043 = vmatpush2.bf16.msra.mxu0 0
      %1044 = vmatprep.subr.bf16.mxu0 0
      %1045 = vmatpush2.bf16.msra.mxu0 0
      %1046 = vmatprep.subr.bf16.mxu0 0
      %1047 = vmatpush2.bf16.msra.mxu0 0
      %1048 = vmatprep.mubr.bf16.mxu0 0
      %1049 = vmatmul.mubr.bf16.gmra.mxu0 %v971
      %v1050 = vpop.f32.mrf.mxu0
      %v1051 = vadd.f32 0.0, %v1050
      %v1052 = vpop.f32.mrf.mxu0
      %v1053 = vpop.f32.mrf.mxu0
      %v1054 = vadd.f32 0.0, %v1053
      %v1055 = vpop.f32.mrf.mxu0
      %1056 = vdwg.mxu0
      %v1057 = vld [vmem:[%s4] sm:$0xff]
      %v1058 = vld [vmem:[%s4 + $0x8] sm:$0xff]
      %v1059 = vld [vmem:[%s4 + $0x10] sm:$0xff]
      %v1060 = vld [vmem:[%s4 + $0x18] sm:$0xff]
      %v1061 = vld [vmem:[%s4 + $0x20] sm:$0xff]
      %v1062 = vld [vmem:[%s4 + $0x28] sm:$0xff]
      %v1063 = vmul.f32 %v1008, %v1057
      %v1064 = vmul.f32 %v1010, %v1058
      %v1065 = vmul.f32 %v1051, %v1059
      %v1066 = vmul.f32 %v1012, %v1060
      %v1067 = vmul.f32 %v1014, %v1061
      %v1068 = vmul.f32 %v1054, %v1062
      %v1069 = vld [vmem:[%s5] sm:$0xff]
      %v1070 = vld [vmem:[%s5 + $0x8] sm:$0xff]
      %v1071 = vld [vmem:[%s5 + $0x10] sm:$0xff]
      %v1072 = vld [vmem:[%s5 + $0x18] sm:$0xff]
      %v1073 = vld [vmem:[%s5 + $0x20] sm:$0xff]
      %v1074 = vld [vmem:[%s5 + $0x28] sm:$0xff]
      %v1075 = vadd.f32 %v1063, %v1069
      %v1076 = vadd.f32 %v1064, %v1070
      %v1077 = vadd.f32 %v1065, %v1071
      %v1078 = vadd.f32 %v1066, %v1072
      %v1079 = vadd.f32 %v1067, %v1073
      %v1080 = vadd.f32 %v1068, %v1074
      %v1081 = vmax.f32 %v1075, 0.0
      %v1082 = vmax.f32 %v1076, 0.0
      %v1083 = vmax.f32 %v1077, 0.0
      %v1084 = vmax.f32 %v1078, 0.0
      %v1085 = vmax.f32 %v1079, 0.0
      %v1086 = vmax.f32 %v1080, 0.0
      %v1087 = vpack.c.bf16 %v1084, %v1081
      %v1088 = vpack.c.bf16 %v1085, %v1082
      %v1089 = vpack.c.bf16 %v1086, %v1083
      %v1090 = vld [vmem:[%s3] sm:$0xff]
      %v1091 = vld [vmem:[%s3 + $0x8] sm:$0xf]
      %v1092 = vld [vmem:[%s3 + $0xc] sm:$0xff]
      %v1093 = vld [vmem:[%s3 + $0x14] sm:$0xf]
      %v1094 = vld [vmem:[%s3 + $0x18] sm:$0xff]
      %v1095 = vld [vmem:[%s3 + $0x20] sm:$0xf]
      %v1096 = vld [vmem:[%s3 + $0x24] sm:$0xff]
      %v1097 = vld [vmem:[%s3 + $0x2c] sm:$0xf]
      %v1098 = vld [vmem:[%s3 + $0x30] sm:$0xff]
      %v1099 = vld [vmem:[%s3 + $0x38] sm:$0xf]
      %v1100 = vld [vmem:[%s3 + $0x3c] sm:$0xff]
      %v1101 = vld [vmem:[%s3 + $0x44] sm:$0xf]
      %v1102 = vld [vmem:[%s3 + $0x48] sm:$0xff]
      %v1103 = vld [vmem:[%s3 + $0x50] sm:$0xf]
      %v1104 = vld [vmem:[%s3 + $0x54] sm:$0xff]
      %v1105 = vld [vmem:[%s3 + $0x5c] sm:$0xf]
      %v1122 = vunpack.c.l.b16 %v1090
      %v1123 = vunpack.c.h.b16 %v1090
      %v1124 = vunpack.c.l.b16 %v1091
      %v1125 = vunpack.c.l.b16 %v1092
      %v1126 = vunpack.c.h.b16 %v1092
      %v1127 = vunpack.c.l.b16 %v1093
      %v1128 = vunpack.c.l.b16 %v1094
      %v1129 = vunpack.c.h.b16 %v1094
      %v1130 = vunpack.c.l.b16 %v1095
      %v1131 = vunpack.c.l.b16 %v1096
      %v1132 = vunpack.c.h.b16 %v1096
      %v1133 = vunpack.c.l.b16 %v1097
      %v1134 = vunpack.c.l.b16 %v1098
      %v1135 = vunpack.c.h.b16 %v1098
      %v1136 = vunpack.c.l.b16 %v1099
      %v1137 = vunpack.c.l.b16 %v1100
      %v1138 = vunpack.c.h.b16 %v1100
      %v1139 = vunpack.c.l.b16 %v1101
      %v1140 = vunpack.c.l.b16 %v1102
      %v1141 = vunpack.c.h.b16 %v1102
      %v1142 = vunpack.c.l.b16 %v1103
      %v1143 = vunpack.c.l.b16 %v1104
      %v1144 = vunpack.c.h.b16 %v1104
      %v1145 = vunpack.c.l.b16 %v1105
      %v1146 = vpack.c.b16 %v1125, %v1122
      %v1147 = vpack.c.b16 %v1126, %v1123
      %v1148 = vpack.c.b16 %v1127, %v1124
      %v1149 = vpack.c.b16 %v1131, %v1128
      %v1150 = vpack.c.b16 %v1132, %v1129
      %v1151 = vpack.c.b16 %v1133, %v1130
      %v1152 = vpack.c.b16 %v1137, %v1134
      %v1153 = vpack.c.b16 %v1138, %v1135
      %v1154 = vpack.c.b16 %v1139, %v1136
      %v1155 = vpack.c.b16 %v1143, %v1140
      %v1156 = vpack.c.b16 %v1144, %v1141
      %v1157 = vpack.c.b16 %v1145, %v1142
      %1170 = vmatprep.subr.bf16.mxu0 0
      %1171 = vmatpush1.bf16.xpose.msra.mxu0 0
      %1172 = vmatprep.subr.bf16.mxu0 0
      %1173 = vmatpush1.bf16.xpose.msra.mxu0 0
      %1174 = vmatprep.subr.bf16.mxu0 0
      %1175 = vmatpush1.bf16.xpose.msra.mxu0 0
      %1176 = vmatprep.subr.bf16.mxu0 0
      %1177 = vmatpush1.bf16.xpose.msra.mxu0 0
      %1178 = vmatprep.subr.bf16.mxu0 %v1156
      %1179 = vmatpush1.bf16.xpose.msra.mxu0 %v1155
      %1180 = vmatprep.subr.bf16.mxu0 %v1153
      %1181 = vmatpush1.bf16.xpose.msra.mxu0 %v1152
      %1182 = vmatprep.subr.bf16.mxu0 %v1150
      %1183 = vmatpush1.bf16.xpose.msra.mxu0 %v1149
      %1184 = vmatprep.subr.bf16.mxu0 %v1147
      %1185 = vmatpush1.bf16.xpose.msra.mxu0 %v1146
      %1186 = vmatprep.subr.bf16.mxu0 0
      %1187 = vmatpush2.bf16.xpose.msra.mxu0 0
      %1188 = vmatprep.subr.bf16.mxu0 0
      %1189 = vmatpush2.bf16.xpose.msra.mxu0 0
      %1190 = vmatprep.subr.bf16.mxu0 0
      %1191 = vmatpush2.bf16.xpose.msra.mxu0 0
      %1192 = vmatprep.subr.bf16.mxu0 0
      %1193 = vmatpush2.bf16.xpose.msra.mxu0 0
      %1194 = vmatprep.subr.bf16.mxu0 0
      %1195 = vmatpush2.bf16.xpose.msra.mxu0 0
      %1196 = vmatprep.subr.bf16.mxu0 0
      %1197 = vmatpush2.bf16.xpose.msra.mxu0 0
      %1198 = vmatprep.subr.bf16.mxu0 0
      %1199 = vmatpush2.bf16.xpose.msra.mxu0 0
      %1200 = vmatprep.subr.bf16.mxu0 0
      %1201 = vmatpush2.bf16.xpose.msra.mxu0 0
      %1202 = vmatprep.mubr.bf16.mxu0 %v1088
      %1203 = vmatmul.mubr.bf16.gmra.mxu0 %v1087
      %v1204 = vpop.f32.mrf.mxu0
      %v1205 = vadd.f32 0.0, %v1204
      %v1206 = vpop.f32.mrf.mxu0
      %v1207 = vpop.f32.mrf.mxu0
      %v1208 = vadd.f32 0.0, %v1207
      %v1209 = vpop.f32.mrf.mxu0
      %1210 = vdwg.mxu0
      %1211 = vmatprep.subr.bf16.mxu0 0
      %1212 = vmatpush1.bf16.xpose.msra.mxu0 0
      %1213 = vmatprep.subr.bf16.mxu0 0
      %1214 = vmatpush1.bf16.xpose.msra.mxu0 0
      %1215 = vmatprep.subr.bf16.mxu0 0
      %1216 = vmatpush1.bf16.xpose.msra.mxu0 0
      %1217 = vmatprep.subr.bf16.mxu0 0
      %1218 = vmatpush1.bf16.xpose.msra.mxu0 0
      %1219 = vmatprep.subr.bf16.mxu0 0
      %1220 = vmatpush1.bf16.xpose.msra.mxu0 %v1157
      %1221 = vmatprep.subr.bf16.mxu0 0
      %1222 = vmatpush1.bf16.xpose.msra.mxu0 %v1154
      %1223 = vmatprep.subr.bf16.mxu0 0
      %1224 = vmatpush1.bf16.xpose.msra.mxu0 %v1151
      %1225 = vmatprep.subr.bf16.mxu0 0
      %1226 = vmatpush1.bf16.xpose.msra.mxu0 %v1148
      %1227 = vmatprep.subr.bf16.mxu0 0
      %1228 = vmatpush2.bf16.xpose.msra.mxu0 0
      %1229 = vmatprep.subr.bf16.mxu0 0
      %1230 = vmatpush2.bf16.xpose.msra.mxu0 0
      %1231 = vmatprep.subr.bf16.mxu0 0
      %1232 = vmatpush2.bf16.xpose.msra.mxu0 0
      %1233 = vmatprep.subr.bf16.mxu0 0
      %1234 = vmatpush2.bf16.xpose.msra.mxu0 0
      %1235 = vmatprep.subr.bf16.mxu0 0
      %1236 = vmatpush2.bf16.xpose.msra.mxu0 0
      %1237 = vmatprep.subr.bf16.mxu0 0
      %1238 = vmatpush2.bf16.xpose.msra.mxu0 0
      %1239 = vmatprep.subr.bf16.mxu0 0
      %1240 = vmatpush2.bf16.xpose.msra.mxu0 0
      %1241 = vmatprep.subr.bf16.mxu0 0
      %1242 = vmatpush2.bf16.xpose.msra.mxu0 0
      %1243 = vmatprep.mubr.bf16.mxu0 0
      %1244 = vmatmul.mubr.bf16.gmra.mxu0 %v1089
      %v1245 = vpop.f32.mrf.mxu0
      %v1246 = vadd.f32 %v1205, %v1245
      %v1247 = vpop.f32.mrf.mxu0
      %v1248 = vpop.f32.mrf.mxu0
      %v1249 = vadd.f32 %v1208, %v1248
      %v1250 = vpop.f32.mrf.mxu0
      %1251 = vdwg.mxu0
      %v1252 = vtanh.pop %v1246
      %v1253 = vtanh.pop %v1249
      %v1254 = vadd.f32 %v1252, 1.0
      %v1255 = vadd.f32 %v1253, 1.0
      %v1257 = vrot.slane %v1254, 4
      %v1259 = vadd.f32 %v1254, %v1257
      %v1260 = vmul.f32 %v1259, 0.25
      %vm1261 = vcmask 519168
      %1262 = vst.msk [vmem:[%s303] sm:$0xf] %vm1261, %v1260
      %v1263 = vmul.f32 %v1255, 0.5
      %1264 = vst.msk [vmem:[%s307] sm:$0xff] %vm325, %v1263
      %p1265 = scmp.lt.s32.totalorder %s19, 3
      %s1266 = scalar_select %p1265, %s19, 3
      %s1267 = smul.addr %s1266, 4
      %s1268 = scalar_lea.vmem %s6, %s1267
      %p1269 = scmp.lt.s32.totalorder %s19, 3
      %s1270 = scalar_select %p1269, %s19, 3
      %s1271 = smul.addr %s1270, 8
      %s1272 = scalar_lea.vmem %s7, %s1271
      // Predicated region
      $region45: #{tdm_forward.1} parent=43 // pred_check
        %p1273 = pneg %p173
      $region46: #{tdm_forward.1} parent=43 // pred_check_branch
        %1275 = sbr.rel (%p1273) target = $region48
      $region47: #{tdm_forward.1} parent=43 // pred_region
        _
      $region48: #{tdm_forward.1} parent=43 // pred_fallthru
        _
      // Predicated region
      $region49: #{tdm_forward.1} parent=43 // pred_check
        %p1276 = pneg %p199
      $region50: #{tdm_forward.1} parent=43 // pred_check_branch
        %1278 = sbr.rel (%p1276) target = $region52
      $region51: #{tdm_forward.1} parent=43 // pred_region
        _
      $region52: #{tdm_forward.1} parent=43 // pred_fallthru
        _
    $region44: #{tdm_forward.1} parent=5 // pred_fallthru
      _
    %p1279 = scmp.le.s32.totalorder 2, %s14
    // Predicated region
    $region53: #{tdm_forward.1} parent=5 // pred_check
      %p1280 = pneg %p1279
    $region54: #{tdm_forward.1} parent=5 // pred_check_branch
      %1282 = sbr.rel (%p1280) target = $region56
    $region55: #{tdm_forward.1} parent=5 // pred_region
      %s1283 = ssub.s32 %s14, 2
      // Predicated region
      $region57: #{tdm_forward.1} parent=55 // pred_check
        %p1284 = pneg %p179
      $region58: #{tdm_forward.1} parent=55 // pred_check_branch
        %1286 = sbr.rel (%p1284) target = $region60
      $region59: #{tdm_forward.1} parent=55 // pred_region
        %p1287 = scmp.lt.s32.totalorder %s20, 3
        %s1288 = scalar_select %p1287, %s20, 3
        %s1289 = smul.addr %s1288, 4
        %s1290 = scalar_lea.vmem %s6, %s1289
      $region60: #{tdm_forward.1} parent=55 // pred_fallthru
        _
      // Predicated region
      $region61: #{tdm_forward.1} parent=55 // pred_check
        %p1291 = pneg %p205
      $region62: #{tdm_forward.1} parent=55 // pred_check_branch
        %1293 = sbr.rel (%p1291) target = $region64
      $region63: #{tdm_forward.1} parent=55 // pred_region
        %p1294 = scmp.lt.s32.totalorder %s20, 3
        %s1295 = scalar_select %p1294, %s20, 3
        %s1296 = smul.addr %s1295, 8
        %s1297 = scalar_lea.vmem %s7, %s1296
      $region64: #{tdm_forward.1} parent=55 // pred_fallthru
        _
    $region56: #{tdm_forward.1} parent=5 // pred_fallthru
      _
  $region6: #{tdm_forward.1} parent=0 // loop_footer
    %s18 = sadd.s32 1, %s14
  $region7: #{tdm_forward.1} parent=0 // loop_footer_branch
    %13 = sbr.rel target = $region3
  $region8: #{tdm_forward.1} parent=0 // loop_exit
    _

</llo_original>
